<compile_context>
chip_gen: v7x
topology: tpu7x:2x2x1
jax: 0.10.0
libtpu: 0.0.40
codegen_flags: <defaults>
</compile_context>

<pallas_src>
import math
from functools import partial

import jax
import jax.numpy as jnp
from jax.experimental import pallas as pl
from jax.experimental.pallas import tpu as pltpu


# ----------------------------------------------------------------------------
# Per-generation VMEM budget
# ----------------------------------------------------------------------------
def _detect_vmem_limit():
    try:
        info = pltpu.get_tpu_info()
        cap = getattr(info, "vmem_capacity_bytes", None)
        if cap:
            return int(max(32 * 1024 * 1024,
                           min(cap * 3 // 4, 100 * 1024 * 1024)))
    except Exception:
        pass
    return 48 * 1024 * 1024      # safe on v7x (64 MiB physical), fine on v5e/v6e


_VMEM_LIMIT = _detect_vmem_limit()


# ----------------------------------------------------------------------------
# Elementwise helpers (exp / tanh / mul only -> VPU + EUP friendly)
# ----------------------------------------------------------------------------
def _erf(x):
    # Abramowitz & Stegun 7.1.26, |err| < 1.5e-7 (~f32 ulp)
    a1, a2, a3, a4, a5 = 0.254829592, -0.284496736, 1.421413741, -1.453152027, 1.061405429
    p = 0.3275911
    sign = jnp.where(x >= 0.0, 1.0, -1.0)
    ax = jnp.abs(x)
    t = 1.0 / (1.0 + p * ax)
    poly = ((((a5 * t + a4) * t + a3) * t + a2) * t + a1) * t
    return sign * (1.0 - poly * jnp.exp(-ax * ax))


def _gelu(x):
    # exact (erf) GELU == torch.nn.GELU() default
    return 0.5 * x * (1.0 + _erf(x * (1.0 / math.sqrt(2.0))))


def _sigmoid(x):
    return 1.0 / (1.0 + jnp.exp(-x))


def _apply_act(x, act):
    if act == "gelu":
        return _gelu(x)
    if act == "tanh":
        return jnp.tanh(x)
    return x


def _round_up(x, m):
    return (x + m - 1) // m * m


def _cdiv(a, b):
    return -(-a // b)


def _halo_block(TL, halo):
    """Smallest multiple of 16 that divides TL and covers `halo` rows."""
    h = _round_up(max(halo, 1), 16)
    while TL % h != 0:
        h += 16
    return h


def _conv_tile(cin, cout):
    """L-tile target: big tiles for the small-channel, memory-bound tail."""
    c = max(cin, cout)
    if c >= 512:
        return 512
    if c >= 128:
        return 1024
    return 2048


# ----------------------------------------------------------------------------
# Pallas kernels
# ----------------------------------------------------------------------------
def _make_conv_kernel(K, dilation, TL, has_halo, act):
    """out = act( sum_k x[l + k*d] @ W[k] + b )  for one (batch, L-tile) block."""

    def kernel(*refs):
        if has_halo:
            x0_ref, xh_ref, w_ref, b_ref, o_ref = refs
            x = jnp.concatenate([x0_ref[0], xh_ref[0]], axis=0)   # (TL + H, Cin) bf16
        else:
            x0_ref, w_ref, b_ref, o_ref = refs
            x = x0_ref[0]                                         # (TL, Cin)
        cout = o_ref.shape[-1]
        acc = jnp.zeros((TL, cout), jnp.float32)
        for k in range(K):
            xk = x[k * dilation: k * dilation + TL, :] if has_halo else x
            acc = acc + jnp.dot(xk, w_ref[k], preferred_element_type=jnp.float32)
        acc = acc + b_ref[...]
        out = _apply_act(acc, act)
        o_ref[0] = out.astype(o_ref.dtype)

    return kernel


def _make_resblock_kernel(dilation, TL, act):
    """Fused Residual_block: skip(1x1) ; gated dilated 3-tap ; conv2(1x1)+skip (+GELU)."""
    d = dilation

    def kernel(x0_ref, xh_ref, ws_ref, bs_ref, w1a_ref, b1a_ref,
               w1b_ref, b1b_ref, w2_ref, b2_ref, o_ref):
        x = jnp.concatenate([x0_ref[0], xh_ref[0]], axis=0)       # (TL + H, C) bf16
        C = o_ref.shape[-1]

        # 1x1 skip conv on the un-padded centre rows (reflect pad is d each side)
        xc = x[d: d + TL, :]
        skip = jnp.dot(xc, ws_ref[0], preferred_element_type=jnp.float32) + bs_ref[...]

        # gated dilated conv1: two lane-aligned halves -> two accumulators
        acc_a = jnp.zeros((TL, C), jnp.float32)
        acc_b = jnp.zeros((TL, C), jnp.float32)
        for k in range(3):
            xk = x[k * d: k * d + TL, :]
            acc_a = acc_a + jnp.dot(xk, w1a_ref[k], preferred_element_type=jnp.float32)
            acc_b = acc_b + jnp.dot(xk, w1b_ref[k], preferred_element_type=jnp.float32)
        h = (jnp.tanh(acc_a + b1a_ref[...]) *
             _sigmoid(acc_b + b1b_ref[...])).astype(jnp.bfloat16)

        # 1x1 conv2 + residual skip (+ fused following GELU)
        out = jnp.dot(h, w2_ref[0], preferred_element_type=jnp.float32) + b2_ref[...] + skip
        if act == "gelu":
            out = _gelu(out)
        o_ref[0] = out.astype(o_ref.dtype)

    return kernel


# ----------------------------------------------------------------------------
# Wrappers (padding / tiling / BlockSpecs)
# ----------------------------------------------------------------------------
def conv1d_pallas(x, w_taps, b_row, *, dilation=1, act="none",
                  out_dtype=jnp.bfloat16, reflect_pad=0, zeros_left=0,
                  out_len=None, trim=True):
    """out[l] = act( sum_k P[l + k*d] @ W[k] + b ),  l in [0, out_len)
       where P = [reflect_left(rp) | zeros(zl) | x | reflect_right(rp) | zeros...]
       is built with ONE concatenate.  x:(B, L, Cin) bf16; w_taps:(K, Cin, Cout)
       bf16; b_row:(1, Cout) f32."""
    B, L, Cin = x.shape
    K = w_taps.shape[0]
    Cout = w_taps.shape[2]
    d = dilation
    halo = (K - 1) * d
    if out_len is None:
        out_len = L + 2 * reflect_pad + zeros_left - halo
    assert out_len > 0
    if reflect_pad:
        assert reflect_pad < L, "reflection pad must be < sequence length"

    TL = min(_conv_tile(Cin, Cout), _round_up(out_len, 16))
    if halo:
        TL = max(TL, _round_up(halo, 16))
    n_tiles = _cdiv(out_len, TL)
    has_halo = halo > 0
    total = (n_tiles + (1 if has_halo else 0)) * TL

    # One concatenate builds reflect / zero left pads + the right tile padding.
    pieces = []
    if reflect_pad:
        pieces.append(jnp.flip(x[:, 1:reflect_pad + 1, :], axis=1))
    if zeros_left:
        pieces.append(jnp.zeros((B, zeros_left, Cin), x.dtype))
    pieces.append(x)
    if reflect_pad:
        pieces.append(jnp.flip(x[:, L - 1 - reflect_pad:L - 1, :], axis=1))
    cur = 2 * reflect_pad + zeros_left + L
    assert total >= cur
    if total > cur:
        pieces.append(jnp.zeros((B, total - cur, Cin), x.dtype))
    xp = jnp.concatenate(pieces, axis=1) if len(pieces) > 1 else x

    in_specs = [pl.BlockSpec((1, TL, Cin), lambda bb, j: (bb, j, 0))]
    args = [xp]
    if has_halo:
        H = _halo_block(TL, halo)
        rb = TL // H
        in_specs.append(pl.BlockSpec((1, H, Cin), lambda bb, j: (bb, (j + 1) * rb, 0)))
        args.append(xp)
    in_specs += [pl.BlockSpec((K, Cin, Cout), lambda bb, j: (0, 0, 0)),
                 pl.BlockSpec((1, Cout), lambda bb, j: (0, 0))]
    args += [w_taps, b_row]

    out = pl.pallas_call(
        _make_conv_kernel(K, d, TL, has_halo, act),
        out_shape=jax.ShapeDtypeStruct((B, n_tiles * TL, Cout), out_dtype),
        grid=(B, n_tiles),
        in_specs=in_specs,
        out_specs=pl.BlockSpec((1, TL, Cout), lambda bb, j: (bb, j, 0)),
        compiler_params=pltpu.CompilerParams(
            dimension_semantics=("parallel", "parallel"),
            vmem_limit_bytes=_VMEM_LIMIT),
    )(*args)
    return out[:, :out_len, :] if trim else out


def deconv1d_pallas(x, p, *, kernel_size, stride, padding, act="none",
                    out_dtype=jnp.bfloat16):
    """Fused polyphase ConvTranspose1d.
       ONE conv with n_max = ceil(K/s) taps produces phase-major (M, s*Cout)
       blocks z[m, r*Cout+c] = sum_j x[m-j] . W[:, :, r+j*s]; row-major reshape
       to (M*s, Cout) is free and index i == output position t = i - padding."""
    B, L, Cin = x.shape
    K, s, pd = kernel_size, stride, padding
    SCout = p["w_taps"].shape[2]
    Cout = SCout // s
    n_max = _cdiv(K, s)
    L_out = (L - 1) * s - 2 * pd + K
    M = _cdiv(L_out + pd, s)                     # phase rows needed to cover [0, L_out)

    z = conv1d_pallas(x, p["w_taps"], p["b_row"], dilation=1, act=act,
                      out_dtype=out_dtype, zeros_left=n_max - 1,
                      out_len=M, trim=False)     # (B, Lp, s*Cout), Lp >= M
    Lp = z.shape[1]
    y = z.reshape(B, Lp * s, Cout)               # metadata-only interleave
    return y[:, pd: pd + L_out, :]


def residual_block_pallas(x, p, *, dilation, post_act="none", out_dtype=jnp.bfloat16):
    """Fused residual block; x:(B, L, C) bf16.  Reflect + tile pad in ONE concat."""
    B, L, C = x.shape
    d = dilation
    assert d < L, "reflection pad requires dilation < sequence length"
    halo = 2 * d

    TL = min(_conv_tile(C, C), _round_up(L, 16))
    TL = max(TL, _round_up(halo, 16))
    n_tiles = _cdiv(L, TL)
    H = _halo_block(TL, halo)
    rb = TL // H
    total = (n_tiles + 1) * TL

    left = jnp.flip(x[:, 1:d + 1, :], axis=1)
    right = jnp.flip(x[:, L - 1 - d:L - 1, :], axis=1)
    pieces = [left, x, right]
    tail = total - (L + 2 * d)
    if tail > 0:
        pieces.append(jnp.zeros((B, tail, C), x.dtype))
    xpad = jnp.concatenate(pieces, axis=1)

    x_spec = pl.BlockSpec((1, TL, C), lambda bb, j: (bb, j, 0))
    halo_spec = pl.BlockSpec((1, H, C), lambda bb, j: (bb, (j + 1) * rb, 0))
    w1_spec = pl.BlockSpec((1, C, C), lambda bb, j: (0, 0, 0))
    w3_spec = pl.BlockSpec((3, C, C), lambda bb, j: (0, 0, 0))
    b_spec = pl.BlockSpec((1, C), lambda bb, j: (0, 0))

    out = pl.pallas_call(
        _make_resblock_kernel(d, TL, post_act),
        out_shape=jax.ShapeDtypeStruct((B, n_tiles * TL, C), out_dtype),
        grid=(B, n_tiles),
        in_specs=[x_spec, halo_spec, w1_spec, b_spec, w3_spec, b_spec,
                  w3_spec, b_spec, w1_spec, b_spec],
        out_specs=pl.BlockSpec((1, TL, C), lambda bb, j: (bb, j, 0)),
        compiler_params=pltpu.CompilerParams(
            dimension_semantics=("parallel", "parallel"),
            vmem_limit_bytes=_VMEM_LIMIT),
    )(xpad, xpad, p["w_skip"], p["b_skip"], p["w1a"], p["b1a"],
      p["w1b"], p["b1b"], p["w2"], p["b2"])
    return out[:, :L, :]


# ----------------------------------------------------------------------------
# Decoder forward (NCL in -> NCL out), jitted with static config
# ----------------------------------------------------------------------------
@partial(jax.jit, static_argnums=(2, 3, 4, 5, 6))
def decoder_forward(params, x_ncl, hidden_layer_num, residual_channels,
                    kernal_size, stride, pad):
    x = jnp.transpose(x_ncl.astype(jnp.bfloat16), (0, 2, 1))      # (B, L, d_con)

    # conv_top: pad, conv7, GELU, pad, conv7  (+ GELU head of conv_middle stage 0 fused)
    x = conv1d_pallas(x, params["top1"]["w"], params["top1"]["b"],
                      reflect_pad=3, act="gelu")
    x = conv1d_pallas(x, params["top2"]["w"], params["top2"]["b"],
                      reflect_pad=3, act="gelu")

    # conv_middle: [GELU (fused into previous op), deconv, residual stack] per stage
    for i in range(len(residual_channels)):
        H = hidden_layer_num[i]
        x = deconv1d_pallas(x, params["deconv"][i], kernel_size=kernal_size[i],
                            stride=stride[i], padding=pad[i],
                            act=("gelu" if H == 0 else "none"))
        for j in range(H):
            post = "gelu" if j == H - 1 else "none"
            x = residual_block_pallas(x, params["stack"][i][j],
                                      dilation=3 ** j, post_act=post)

    # conv_bottom: (leading GELU already fused), pad, conv7 32->1, tanh
    x = conv1d_pallas(x, params["bottom"]["w"], params["bottom"]["b"],
                      reflect_pad=3, act="tanh", out_dtype=jnp.float32)
    return jnp.transpose(x, (0, 2, 1))                            # (B, 1, L_out)


# ----------------------------------------------------------------------------
# Parameter init (torch layout, normal(0, 0.02), zero bias) + one-time prep
# ----------------------------------------------------------------------------
def init_decoder_params(key, hidden_layer_num, residual_channels, kernal_size,
                        stride, pad, d_con):
    keys = iter(jax.random.split(key, 256))
    nk = lambda: next(keys)

    def conv_w(cout, cin, k):     # torch Conv1d layout (Cout, Cin, K)
        return jax.random.normal(nk(), (cout, cin, k), jnp.float32) * 0.02

    def deconv_w(cin, cout, k):   # torch ConvTranspose1d layout (Cin, Cout, K)
        return jax.random.normal(nk(), (cin, cout, k), jnp.float32) * 0.02

    raw = {
        "top1": (conv_w(512, d_con, 7), jnp.zeros((512,), jnp.float32)),
        "top2": (conv_w(512, 512, 7), jnp.zeros((512,), jnp.float32)),
        "deconv": [],
        "stack": [],
        "bottom": (conv_w(1, 32, 7), jnp.zeros((1,), jnp.float32)),
    }
    for i, C in enumerate(residual_channels):
        raw["deconv"].append((deconv_w(2 * C, C, kernal_size[i]),
                              jnp.zeros((C,), jnp.float32)))
        blocks = []
        for _ in range(hidden_layer_num[i]):
            blocks.append({
                "skip": (conv_w(C, C, 1), jnp.zeros((C,), jnp.float32)),
                "conv1": (conv_w(2 * C, C, 3), jnp.zeros((2 * C,), jnp.float32)),
                "conv2": (conv_w(C, C, 1), jnp.zeros((C,), jnp.float32)),
            })
        raw["stack"].append(blocks)
    return raw


def _conv_taps(w_torch):   # (Cout, Cin, K) -> (K, Cin, Cout) bf16
    return jnp.transpose(w_torch, (2, 1, 0)).astype(jnp.bfloat16)


def prepare_decoder_params(raw, kernal_size, stride, pad):
    brow = lambda b: b.reshape(1, -1).astype(jnp.float32)

    prepared = {
        "top1": {"w": _conv_taps(raw["top1"][0]), "b": brow(raw["top1"][1])},
        "top2": {"w": _conv_taps(raw["top2"][0]), "b": brow(raw["top2"][1])},
        "bottom": {"w": _conv_taps(raw["bottom"][0]), "b": brow(raw["bottom"][1])},
        "deconv": [],
        "stack": [],
    }

    # Fused polyphase deconv weights: tap u, lane block r holds w[:, :, r + (n_max-1-u)*s]
    for i, (w, b) in enumerate(raw["deconv"]):
        K, s = kernal_size[i], stride[i]
        n_max = _cdiv(K, s)
        Cin, Cout = w.shape[0], w.shape[1]
        taps = []
        for u in range(n_max):
            j = n_max - 1 - u
            cols = []
            for r in range(s):
                k = r + j * s
                if k < K:
                    cols.append(w[:, :, k])                       # (Cin, Cout)
                else:
                    cols.append(jnp.zeros((Cin, Cout), w.dtype))
            taps.append(jnp.concatenate(cols, axis=1))            # (Cin, s*Cout)
        w_taps = jnp.stack(taps, axis=0).astype(jnp.bfloat16)     # (n_max, Cin, s*Cout)
        b_row = jnp.tile(b, s).reshape(1, -1).astype(jnp.float32)
        prepared["deconv"].append({"w_taps": w_taps, "b_row": b_row})

    for blocks in raw["stack"]:
        pblocks = []
        for blk in blocks:
            ws, bs = blk["skip"]
            w1, b1 = blk["conv1"]
            w2, b2 = blk["conv2"]
            C = ws.shape[0]
            pblocks.append({
                "w_skip": _conv_taps(ws), "b_skip": brow(bs),
                "w1a": _conv_taps(w1[:C]), "b1a": brow(b1[:C]),   # tanh half
                "w1b": _conv_taps(w1[C:]), "b1b": brow(b1[C:]),   # sigmoid half
                "w2": _conv_taps(w2), "b2": brow(b2),
            })
        prepared["stack"].append(pblocks)
    return prepared


# ----------------------------------------------------------------------------
# Direct f32 references (built from raw torch-layout weights) for verification
# ----------------------------------------------------------------------------
def _bf32(a):  # value parity with bf16 kernel operands
    return a.astype(jnp.bfloat16).astype(jnp.float32)


def _ref_conv_reflect(x, w_torch, b, pad_w, act):
    w = _bf32(w_torch)                                            # (Cout, Cin, K)
    K = w.shape[2]
    xp = jnp.pad(x, ((0, 0), (pad_w, pad_w), (0, 0)), mode="reflect")
    L_out = xp.shape[1] - (K - 1)
    out = b.reshape(1, 1, -1) + sum(
        jnp.einsum("blc,oc->blo", xp[:, k:k + L_out, :], w[:, :, k]) for k in range(K))
    if act == "gelu":
        out = jax.nn.gelu(out, approximate=False)
    if act == "tanh":
        out = jnp.tanh(out)
    return out


def _ref_deconv(x, w_torch, b, s, pd):
    w = _bf32(w_torch)                                            # (Cin, Cout, K)
    B, L, _ = x.shape
    Cout, K = w.shape[1], w.shape[2]
    y = jnp.zeros((B, (L - 1) * s + K, Cout), jnp.float32)
    for k in range(K):
        contrib = jnp.einsum("blc,co->blo", x, w[:, :, k])
        y = y.at[:, k:k + (L - 1) * s + 1:s, :].add(contrib)
    y = y + b.reshape(1, 1, -1)
    L_out = (L - 1) * s - 2 * pd + K
    return y[:, pd:pd + L_out, :]


def _ref_resblock(x, blk_raw, d, post_act):
    ws, bs = blk_raw["skip"]
    w1, b1 = blk_raw["conv1"]
    w2, b2 = blk_raw["conv2"]
    ws, w1, w2 = _bf32(ws), _bf32(w1), _bf32(w2)
    C = ws.shape[0]
    L = x.shape[1]
    skip = jnp.einsum("blc,oc->blo", x, ws[:, :, 0]) + bs.reshape(1, 1, -1)
    xp = jnp.pad(x, ((0, 0), (d, d), (0, 0)), mode="reflect")
    g = b1.reshape(1, 1, -1) + sum(
        jnp.einsum("blc,oc->blo", xp[:, k * d:k * d + L, :], w1[:, :, k]) for k in range(3))
    a, bg = g[..., :C], g[..., C:]
    h = (jnp.tanh(a) * jax.nn.sigmoid(bg)).astype(jnp.bfloat16).astype(jnp.float32)
    out = jnp.einsum("blc,oc->blo", h, w2[:, :, 0]) + b2.reshape(1, 1, -1) + skip
    if post_act == "gelu":
        out = jax.nn.gelu(out, approximate=False)
    return out


def _assert_close(got, ref, tol, name):
    err = float(jnp.max(jnp.abs(got.astype(jnp.float32) - ref.astype(jnp.float32))))
    assert err < tol, f"{name} mismatch: max abs err {err}"


# ----------------------------------------------------------------------------
if __name__ == "__main__":
    # Small but architecture-consistent config:
    #   conv_top emits 512 ch -> residual_channels halve 256 -> 32
    B, d_con, T = 2, 8, 8
    hidden_layer_num = (1, 1, 1, 1)
    residual_channels = (256, 128, 64, 32)
    kernal_size = (4, 4, 4, 4)
    stride = (2, 2, 2, 2)
    pad = (1, 1, 1, 1)

    root = jax.random.PRNGKey(0)
    pkey, xkey = jax.random.split(root)
    raw = init_decoder_params(pkey, hidden_layer_num, residual_channels,
                              kernal_size, stride, pad, d_con)
    params = prepare_decoder_params(raw, kernal_size, stride, pad)

    # --- per-op numerical checks (bf16 operands, f32 accumulation both sides) ---
    f32 = jnp.float32
    xc = jax.random.normal(jax.random.PRNGKey(1), (2, 16, d_con), f32).astype(jnp.bfloat16)
    got = conv1d_pallas(xc, params["top1"]["w"], params["top1"]["b"],
                        reflect_pad=3, act="gelu", out_dtype=f32)
    ref = _ref_conv_reflect(xc.astype(f32), raw["top1"][0], raw["top1"][1], 3, "gelu")
    _assert_close(got, ref, 2e-3, "conv_top")

    xd = (jax.random.normal(jax.random.PRNGKey(2), (2, 16, 512), f32) * 0.1).astype(jnp.bfloat16)
    got = deconv1d_pallas(xd, params["deconv"][0], kernel_size=kernal_size[0],
                          stride=stride[0], padding=pad[0], act="none", out_dtype=f32)
    ref = _ref_deconv(xd.astype(f32), raw["deconv"][0][0], raw["deconv"][0][1],
                      stride[0], pad[0])
    _assert_close(got, ref, 2e-3, "deconv_polyphase")

    xr = (jax.random.normal(jax.random.PRNGKey(3), (2, 32, 256), f32) * 0.1).astype(jnp.bfloat16)
    got = residual_block_pallas(xr, params["stack"][0][0], dilation=1,
                                post_act="gelu", out_dtype=f32)
    ref = _ref_resblock(xr.astype(f32), raw["stack"][0][0], 1, "gelu")
    _assert_close(got, ref, 2e-3, "residual_block")

    # --- full forward smoke test ---
    x = jax.random.normal(xkey, (B, d_con, T), jnp.float32)       # PyTorch NCL input
    y = decoder_forward(params, x, hidden_layer_num, residual_channels,
                        kernal_size, stride, pad)
    y = jax.block_until_ready(y)

    # 4 stride-2 transposed convs: T=8 -> 128; final conv maps 32 ch -> 1
    assert y.shape == (B, 1, T * 16), y.shape
    assert bool(jnp.all(jnp.isfinite(y)))
    print("KERNEL_OK")
</pallas_src>

<mosaic_0001>
module attributes {stable_mosaic.version = 11 : i64} {
  func.func @kernel(%arg0: i32, %arg1: i32, %arg2: memref<1x16x8xbf16, #tpu.memory_space<vmem>>, %arg3: memref<1x16x8xbf16, #tpu.memory_space<vmem>>, %arg4: memref<7x8x512xbf16, #tpu.memory_space<vmem>>, %arg5: memref<1x512xf32, #tpu.memory_space<vmem>>, %arg6: memref<1x16x512xf32, #tpu.memory_space<vmem>>) attributes {dimension_semantics = [#tpu.dimension_semantics<parallel>, #tpu.dimension_semantics<parallel>], iteration_bounds = array<i64: 2, 1>, scalar_prefetch = 0 : i64, scratch_operands = 0 : i64, tpu.core_type = #tpu.core_type<tc>, window_params = [{transform_indices = @transform_0, window_bounds = array<i64: 1, 16, 8>}, {transform_indices = @transform_1, window_bounds = array<i64: 1, 16, 8>}, {pipeline_mode = #tpu.pipeline_mode<synchronous>, transform_indices = @transform_2, window_bounds = array<i64: 7, 8, 512>}, {pipeline_mode = #tpu.pipeline_mode<synchronous>, transform_indices = @transform_3, window_bounds = array<i64: 1, 512>}, {transform_indices = @transform_4, window_bounds = array<i64: 1, 16, 512>}]} {
    %c0 = arith.constant 0 : index
    %c0_0 = arith.constant 0 : index
    %c0_1 = arith.constant 0 : index
    %0 = vector.load %arg2[%c0, %c0_0, %c0_1] : memref<1x16x8xbf16, #tpu.memory_space<vmem>>, vector<1x16x8xbf16>
    %1 = vector.shape_cast %0 : vector<1x16x8xbf16> to vector<16x8xbf16>
    %c0_2 = arith.constant 0 : index
    %c0_3 = arith.constant 0 : index
    %c0_4 = arith.constant 0 : index
    %2 = vector.load %arg3[%c0_2, %c0_3, %c0_4] : memref<1x16x8xbf16, #tpu.memory_space<vmem>>, vector<1x16x8xbf16>
    %3 = vector.shape_cast %2 : vector<1x16x8xbf16> to vector<16x8xbf16>
    %4 = tpu.concatenate %1, %3 in 0 : vector<16x8xbf16>, vector<16x8xbf16> -> vector<32x8xbf16>
    %cst = arith.constant 0.000000e+00 : f32
    %5 = vector.broadcast %cst : f32 to vector<16x512xf32>
    %6 = vector.extract_strided_slice %4 {offsets = [0, 0], sizes = [16, 8], strides = [1, 1]} : vector<32x8xbf16> to vector<16x8xbf16>
    %c0_5 = arith.constant 0 : index
    %c0_6 = arith.constant 0 : index
    %c0_7 = arith.constant 0 : index
    %7 = vector.load %arg4[%c0_5, %c0_6, %c0_7] : memref<7x8x512xbf16, #tpu.memory_space<vmem>>, vector<1x8x512xbf16>
    %8 = vector.shape_cast %7 : vector<1x8x512xbf16> to vector<8x512xbf16>
    %cst_8 = arith.constant dense<0.000000e+00> : vector<16x512xf32>
    %9 = tpu.matmul %6, %8, %cst_8 {dimension_numbers = #tpu.dot_dimension_numbers<[1], [0], [0], [1], [0, 0, 1, 1], [], []>} : vector<16x8xbf16>, vector<8x512xbf16>, vector<16x512xf32> -> vector<16x512xf32>
    %10 = arith.addf %5, %9 : vector<16x512xf32>
    %11 = vector.extract_strided_slice %4 {offsets = [1, 0], sizes = [16, 8], strides = [1, 1]} : vector<32x8xbf16> to vector<16x8xbf16>
    %c1 = arith.constant 1 : index
    %c0_9 = arith.constant 0 : index
    %c0_10 = arith.constant 0 : index
    %12 = vector.load %arg4[%c1, %c0_9, %c0_10] : memref<7x8x512xbf16, #tpu.memory_space<vmem>>, vector<1x8x512xbf16>
    %13 = vector.shape_cast %12 : vector<1x8x512xbf16> to vector<8x512xbf16>
    %cst_11 = arith.constant dense<0.000000e+00> : vector<16x512xf32>
    %14 = tpu.matmul %11, %13, %cst_11 {dimension_numbers = #tpu.dot_dimension_numbers<[1], [0], [0], [1], [0, 0, 1, 1], [], []>} : vector<16x8xbf16>, vector<8x512xbf16>, vector<16x512xf32> -> vector<16x512xf32>
    %15 = arith.addf %10, %14 : vector<16x512xf32>
    %16 = vector.extract_strided_slice %4 {offsets = [2, 0], sizes = [16, 8], strides = [1, 1]} : vector<32x8xbf16> to vector<16x8xbf16>
    %c2 = arith.constant 2 : index
    %c0_12 = arith.constant 0 : index
    %c0_13 = arith.constant 0 : index
    %17 = vector.load %arg4[%c2, %c0_12, %c0_13] : memref<7x8x512xbf16, #tpu.memory_space<vmem>>, vector<1x8x512xbf16>
    %18 = vector.shape_cast %17 : vector<1x8x512xbf16> to vector<8x512xbf16>
    %cst_14 = arith.constant dense<0.000000e+00> : vector<16x512xf32>
    %19 = tpu.matmul %16, %18, %cst_14 {dimension_numbers = #tpu.dot_dimension_numbers<[1], [0], [0], [1], [0, 0, 1, 1], [], []>} : vector<16x8xbf16>, vector<8x512xbf16>, vector<16x512xf32> -> vector<16x512xf32>
    %20 = arith.addf %15, %19 : vector<16x512xf32>
    %21 = vector.extract_strided_slice %4 {offsets = [3, 0], sizes = [16, 8], strides = [1, 1]} : vector<32x8xbf16> to vector<16x8xbf16>
    %c3 = arith.constant 3 : index
    %c0_15 = arith.constant 0 : index
    %c0_16 = arith.constant 0 : index
    %22 = vector.load %arg4[%c3, %c0_15, %c0_16] : memref<7x8x512xbf16, #tpu.memory_space<vmem>>, vector<1x8x512xbf16>
    %23 = vector.shape_cast %22 : vector<1x8x512xbf16> to vector<8x512xbf16>
    %cst_17 = arith.constant dense<0.000000e+00> : vector<16x512xf32>
    %24 = tpu.matmul %21, %23, %cst_17 {dimension_numbers = #tpu.dot_dimension_numbers<[1], [0], [0], [1], [0, 0, 1, 1], [], []>} : vector<16x8xbf16>, vector<8x512xbf16>, vector<16x512xf32> -> vector<16x512xf32>
    %25 = arith.addf %20, %24 : vector<16x512xf32>
    %26 = vector.extract_strided_slice %4 {offsets = [4, 0], sizes = [16, 8], strides = [1, 1]} : vector<32x8xbf16> to vector<16x8xbf16>
    %c4 = arith.constant 4 : index
    %c0_18 = arith.constant 0 : index
    %c0_19 = arith.constant 0 : index
    %27 = vector.load %arg4[%c4, %c0_18, %c0_19] : memref<7x8x512xbf16, #tpu.memory_space<vmem>>, vector<1x8x512xbf16>
    %28 = vector.shape_cast %27 : vector<1x8x512xbf16> to vector<8x512xbf16>
    %cst_20 = arith.constant dense<0.000000e+00> : vector<16x512xf32>
    %29 = tpu.matmul %26, %28, %cst_20 {dimension_numbers = #tpu.dot_dimension_numbers<[1], [0], [0], [1], [0, 0, 1, 1], [], []>} : vector<16x8xbf16>, vector<8x512xbf16>, vector<16x512xf32> -> vector<16x512xf32>
    %30 = arith.addf %25, %29 : vector<16x512xf32>
    %31 = vector.extract_strided_slice %4 {offsets = [5, 0], sizes = [16, 8], strides = [1, 1]} : vector<32x8xbf16> to vector<16x8xbf16>
    %c5 = arith.constant 5 : index
    %c0_21 = arith.constant 0 : index
    %c0_22 = arith.constant 0 : index
    %32 = vector.load %arg4[%c5, %c0_21, %c0_22] : memref<7x8x512xbf16, #tpu.memory_space<vmem>>, vector<1x8x512xbf16>
    %33 = vector.shape_cast %32 : vector<1x8x512xbf16> to vector<8x512xbf16>
    %cst_23 = arith.constant dense<0.000000e+00> : vector<16x512xf32>
    %34 = tpu.matmul %31, %33, %cst_23 {dimension_numbers = #tpu.dot_dimension_numbers<[1], [0], [0], [1], [0, 0, 1, 1], [], []>} : vector<16x8xbf16>, vector<8x512xbf16>, vector<16x512xf32> -> vector<16x512xf32>
    %35 = arith.addf %30, %34 : vector<16x512xf32>
    %36 = vector.extract_strided_slice %4 {offsets = [6, 0], sizes = [16, 8], strides = [1, 1]} : vector<32x8xbf16> to vector<16x8xbf16>
    %c6 = arith.constant 6 : index
    %c0_24 = arith.constant 0 : index
    %c0_25 = arith.constant 0 : index
    %37 = vector.load %arg4[%c6, %c0_24, %c0_25] : memref<7x8x512xbf16, #tpu.memory_space<vmem>>, vector<1x8x512xbf16>
    %38 = vector.shape_cast %37 : vector<1x8x512xbf16> to vector<8x512xbf16>
    %cst_26 = arith.constant dense<0.000000e+00> : vector<16x512xf32>
    %39 = tpu.matmul %36, %38, %cst_26 {dimension_numbers = #tpu.dot_dimension_numbers<[1], [0], [0], [1], [0, 0, 1, 1], [], []>} : vector<16x8xbf16>, vector<8x512xbf16>, vector<16x512xf32> -> vector<16x512xf32>
    %40 = arith.addf %35, %39 : vector<16x512xf32>
    %c0_27 = arith.constant 0 : index
    %c0_28 = arith.constant 0 : index
    %41 = vector.load %arg5[%c0_27, %c0_28] : memref<1x512xf32, #tpu.memory_space<vmem>>, vector<1x512xf32>
    %42 = vector.broadcast %41 : vector<1x512xf32> to vector<16x512xf32>
    %43 = arith.addf %40, %42 : vector<16x512xf32>
    %cst_29 = arith.constant 5.000000e-01 : f32
    %44 = vector.broadcast %cst_29 : f32 to vector<16x512xf32>
    %45 = arith.mulf %44, %43 : vector<16x512xf32>
    %cst_30 = arith.constant 0.707106769 : f32
    %46 = vector.broadcast %cst_30 : f32 to vector<16x512xf32>
    %47 = arith.mulf %43, %46 : vector<16x512xf32>
    %cst_31 = arith.constant 0.000000e+00 : f32
    %48 = vector.broadcast %cst_31 : f32 to vector<16x512xf32>
    %49 = arith.cmpf oge, %47, %48 : vector<16x512xf32>
    %cst_32 = arith.constant 1.000000e+00 : f32
    %cst_33 = arith.constant -1.000000e+00 : f32
    %50 = vector.broadcast %cst_32 : f32 to vector<16x512xf32>
    %51 = vector.broadcast %cst_33 : f32 to vector<16x512xf32>
    %52 = arith.select %49, %50, %51 : vector<16x512xi1>, vector<16x512xf32>
    %53 = math.absf %47 : vector<16x512xf32>
    %cst_34 = arith.constant 0.327591091 : f32
    %54 = vector.broadcast %cst_34 : f32 to vector<16x512xf32>
    %55 = arith.mulf %54, %53 : vector<16x512xf32>
    %cst_35 = arith.constant 1.000000e+00 : f32
    %56 = vector.broadcast %cst_35 : f32 to vector<16x512xf32>
    %57 = arith.addf %56, %55 : vector<16x512xf32>
    %cst_36 = arith.constant 1.000000e+00 : f32
    %58 = vector.broadcast %cst_36 : f32 to vector<16x512xf32>
    %59 = arith.divf %58, %57 : vector<16x512xf32>
    %cst_37 = arith.constant 1.06140542 : f32
    %60 = vector.broadcast %cst_37 : f32 to vector<16x512xf32>
    %61 = arith.mulf %60, %59 : vector<16x512xf32>
    %cst_38 = arith.constant -1.45315206 : f32
    %62 = vector.broadcast %cst_38 : f32 to vector<16x512xf32>
    %63 = arith.addf %61, %62 : vector<16x512xf32>
    %64 = arith.mulf %63, %59 : vector<16x512xf32>
    %cst_39 = arith.constant 1.42141378 : f32
    %65 = vector.broadcast %cst_39 : f32 to vector<16x512xf32>
    %66 = arith.addf %64, %65 : vector<16x512xf32>
    %67 = arith.mulf %66, %59 : vector<16x512xf32>
    %cst_40 = arith.constant -0.284496725 : f32
    %68 = vector.broadcast %cst_40 : f32 to vector<16x512xf32>
    %69 = arith.addf %67, %68 : vector<16x512xf32>
    %70 = arith.mulf %69, %59 : vector<16x512xf32>
    %cst_41 = arith.constant 0.254829586 : f32
    %71 = vector.broadcast %cst_41 : f32 to vector<16x512xf32>
    %72 = arith.addf %70, %71 : vector<16x512xf32>
    %73 = arith.mulf %72, %59 : vector<16x512xf32>
    %cst_42 = arith.constant 0.000000e+00 : f32
    %74 = vector.broadcast %cst_42 : f32 to vector<16x512xf32>
    %75 = arith.subf %74, %53 : vector<16x512xf32>
    %76 = arith.mulf %75, %53 : vector<16x512xf32>
    %77 = math.exp %76 : vector<16x512xf32>
    %78 = arith.mulf %73, %77 : vector<16x512xf32>
    %cst_43 = arith.constant 1.000000e+00 : f32
    %79 = vector.broadcast %cst_43 : f32 to vector<16x512xf32>
    %80 = arith.subf %79, %78 : vector<16x512xf32>
    %81 = arith.mulf %52, %80 : vector<16x512xf32>
    %cst_44 = arith.constant 1.000000e+00 : f32
    %82 = vector.broadcast %cst_44 : f32 to vector<16x512xf32>
    %83 = arith.addf %82, %81 : vector<16x512xf32>
    %84 = arith.mulf %45, %83 : vector<16x512xf32>
    %c0_45 = arith.constant 0 : index
    %c0_46 = arith.constant 0 : index
    %c0_47 = arith.constant 0 : index
    %85 = vector.load %arg6[%c0_45, %c0_46, %c0_47] : memref<1x16x512xf32, #tpu.memory_space<vmem>>, vector<1x16x512xf32>
    %86 = vector.shape_cast %85 : vector<1x16x512xf32> to vector<16x512xf32>
    %87 = vector.shape_cast %84 : vector<16x512xf32> to vector<1x16x512xf32>
    tpu.vector_store %arg6[%c0_45, %c0_46, %c0_47], %87 {strides = array<i32>} : memref<1x16x512xf32, #tpu.memory_space<vmem>>, vector<1x16x512xf32>,
    return
  }
  func.func @transform_0(%arg0: i32, %arg1: i32) -> (i32, i32, i32) {
    %c0_i32 = arith.constant 0 : i32
    %c0_i32_0 = arith.constant 0 : i32
    return %arg0, %arg1, %c0_i32 : i32, i32, i32
  }
  func.func @transform_1(%arg0: i32, %arg1: i32) -> (i32, i32, i32) {
    %c1_i32 = arith.constant 1 : i32
    %0 = arith.addi %arg1, %c1_i32 : i32
    %c1_i32_0 = arith.constant 1 : i32
    %1 = arith.muli %0, %c1_i32_0 : i32
    %c0_i32 = arith.constant 0 : i32
    %c0_i32_1 = arith.constant 0 : i32
    return %arg0, %1, %c0_i32 : i32, i32, i32
  }
  func.func @transform_2(%arg0: i32, %arg1: i32) -> (i32, i32, i32) {
    %c0_i32 = arith.constant 0 : i32
    %c0_i32_0 = arith.constant 0 : i32
    %c0_i32_1 = arith.constant 0 : i32
    %c0_i32_2 = arith.constant 0 : i32
    return %c0_i32, %c0_i32_0, %c0_i32_1 : i32, i32, i32
  }
  func.func @transform_3(%arg0: i32, %arg1: i32) -> (i32, i32) {
    %c0_i32 = arith.constant 0 : i32
    %c0_i32_0 = arith.constant 0 : i32
    %c0_i32_1 = arith.constant 0 : i32
    return %c0_i32, %c0_i32_0 : i32, i32
  }
  func.func @transform_4(%arg0: i32, %arg1: i32) -> (i32, i32, i32) {
    %c0_i32 = arith.constant 0 : i32
    %c0_i32_0 = arith.constant 0 : i32
    return %arg0, %arg1, %c0_i32 : i32, i32, i32
  }
}

</mosaic_0001>

<llo_original>
// kernel: tpu_custom_call.1
$region0: #{tpu_custom_call.1}
  #allocation0 [shape = 'u32[]', space=smem, size = 0x4, offset = 0x4, fixed_abs, tag = 'smem constant byte address 0x4 - core index']
  #allocation1 [shape = 'u32[144,128]{1,0:T(1,128)}', space=vmem, size = 0x12000, scoped, tag = 'internal scratch']
  %s0 = inlined_call_operand.vmem [shape: bf16[2,32,8], index: 0, kind: input, shape index: {}]
  %s1 = inlined_call_operand.vmem [shape: bf16[2,32,8], index: 1, kind: input, shape index: {}]
  %s2 = inlined_call_operand.hbm [shape: bf16[7,8,512], index: 2, kind: input, shape index: {}]
  %s3 = inlined_call_operand.vmem [shape: f32[1,512], index: 3, kind: input, shape index: {}]
  %s4 = inlined_call_operand.hbm [shape: f32[2,16,512], index: 4, kind: output, shape index: {}]
  %s5 = sld [smem:[#allocation0]]
  $region53: #{tpu_custom_call.1} parent=0
    _
  %s7 = ssub.s32 1, %s5
  %s8 = scalar_select 0, %s7, %s5
  $region1: #{tpu_custom_call.1} parent=0
    #allocation2 [shape = 'u8[57344]{0}', space=vmem, size = 0xe000, scoped, tag = 'input window, operand 2, single buffered']
    #allocation3 [shape = 's32[2]{0}', space=sflag, size = 0x8, scoped, tag = 'scoped memory for tpu_custom_call.1']
    #allocation4 [shape = 's32[2]{0}', space=sflag, size = 0x8, scoped, tag = 'scoped memory for tpu_custom_call.1']
    #allocation5 [shape = 'u8[65536]{0}', space=vmem, size = 0x10000, scoped, tag = 'output window, operand 0']
    %9 = vsyncpa [#allocation3], 0
    %10 = vsyncpa [#allocation4], 0
    %s11 = scalar_lea.sflag [#allocation4], 1
    %12 = vsyncpa %s11, 0
    loop: start=0, step=1, limit=4
    $region2: #{tpu_custom_call.1} parent=1 // loop_pre_header
      _
    $region3: #{tpu_custom_call.1} parent=1 // loop_header
      %s14 = sphi 0, %s18
      %p15 = scmp.ge.s32.totalorder %s14, 4
      %s21 = sphi 0, %s33
      %s22 = sphi 0, %s29
      %s23 = sphi 0, %s21
      %s24 = sphi 0, %s22
      %s25 = sphi 0, %s23
      %s26 = sphi 0, %s24
      %s38 = sphi 0, %s40
      %s41 = sphi 0, %s38
      %s42 = sphi 0, %s41
      %s58 = sphi 0, %s42
      %s68 = sphi 0, %s70
      %s71 = sphi 0, %s68
      %s72 = sphi 0, %s71
      %s88 = sphi 0, %s72
      %s92 = sphi 0, %s92
      %s94 = sphi 0, %s92
      %s95 = sphi 0, %s94
      %s109 = sphi 0, %s95
      %s113 = sphi 0, %s113
      %s115 = sphi 0, %s113
      %s116 = sphi 0, %s115
      %s130 = sphi 0, %s116
      %s138 = sphi 0, %s140
      %s141 = sphi 0, %s138
      %s142 = sphi 0, %s141
      %s158 = sphi 0, %s142
    $region4: #{tpu_custom_call.1} parent=1 // loop_header_branch
      %17 = sbr.rel (%p15) target = $region8
    $region5: #{tpu_custom_call.1} parent=1 // loop_body
      %s19 = ssub.s32 %s14, 1
      %s20 = ssub.s32 %s14, 2
      %s27 = sadd.s32 1, %s22
      %p28 = scmp.ge.s32.totalorder %s27, 1
      %s29 = scalar_select %p28, 0, %s27
      %s30 = sadd.s32 1, %s21
      %s31 = scalar_select %p28, %s30, %s21
      %p32 = scmp.ge.s32.totalorder %s31, 2
      %s33 = scalar_select %p32, 0, %s31
      %s34 = ssub.s32 %s21, %s33
      %s35 = ssub.s32 %s22, %s29
      %s36 = sor.u32 %s34, %s35
      %p37 = scmp.eq.s32.totalorder %s36, 0
      %s39 = sadd.s32 %s38, 1
      %s40 = scalar_select %p37, %s38, %s39
      %p43 = pneg %p37
      %p44 = scmp.eq.s32.totalorder %s14, 1
      %p45 = por %p43, %p44
      %p46 = scmp.ne.s32.totalorder %s38, %s41
      %p47 = scmp.eq.s32.totalorder %s14, 0
      %p48 = por %p46, %p47
      %p49 = scmp.ne.s32.totalorder %s38, %s41
      %p50 = scmp.eq.s32.totalorder %s19, 1
      %p51 = por %p49, %p50
      %p52 = scmp.ne.s32.totalorder %s41, %s42
      %p53 = scmp.eq.s32.totalorder %s19, 0
      %p54 = por %p52, %p53
      %p55 = scmp.ne.s32.totalorder %s41, %s42
      %p56 = scmp.eq.s32.totalorder %s20, 1
      %p57 = por %p55, %p56
      %p59 = scmp.ne.s32.totalorder %s42, %s58
      %p60 = scmp.eq.s32.totalorder %s20, 0
      %p61 = por %p59, %p60
      %s62 = sadd.s32 %s22, 1
      %s63 = sadd.s32 %s29, 1
      %s64 = ssub.s32 %s21, %s33
      %s65 = ssub.s32 %s62, %s63
      %s66 = sor.u32 %s64, %s65
      %p67 = scmp.eq.s32.totalorder %s66, 0
      %s69 = sadd.s32 %s68, 1
      %s70 = scalar_select %p67, %s68, %s69
      %p73 = pneg %p67
      %p74 = scmp.eq.s32.totalorder %s14, 1
      %p75 = por %p73, %p74
      %p76 = scmp.ne.s32.totalorder %s68, %s71
      %p77 = scmp.eq.s32.totalorder %s14, 0
      %p78 = por %p76, %p77
      %p79 = scmp.ne.s32.totalorder %s68, %s71
      %p80 = scmp.eq.s32.totalorder %s19, 1
      %p81 = por %p79, %p80
      %p82 = scmp.ne.s32.totalorder %s71, %s72
      %p83 = scmp.eq.s32.totalorder %s19, 0
      %p84 = por %p82, %p83
      %p85 = scmp.ne.s32.totalorder %s71, %s72
      %p86 = scmp.eq.s32.totalorder %s20, 1
      %p87 = por %p85, %p86
      %p89 = scmp.ne.s32.totalorder %s72, %s88
      %p90 = scmp.eq.s32.totalorder %s20, 0
      %p91 = por %p89, %p90
      %s93 = sadd.s32 %s92, 1
      %p96 = scmp.eq.s32.totalorder %s14, 1
      %p97 = scmp.ne.s32.totalorder %s92, %s94
      %p98 = scmp.eq.s32.totalorder %s14, 0
      %p99 = por %p97, %p98
      %p100 = scmp.ne.s32.totalorder %s92, %s94
      %p101 = scmp.eq.s32.totalorder %s19, 1
      %p102 = por %p100, %p101
      %p103 = scmp.ne.s32.totalorder %s94, %s95
      %p104 = scmp.eq.s32.totalorder %s19, 0
      %p105 = por %p103, %p104
      %p106 = scmp.ne.s32.totalorder %s94, %s95
      %p107 = scmp.eq.s32.totalorder %s20, 1
      %p108 = por %p106, %p107
      %p110 = scmp.ne.s32.totalorder %s95, %s109
      %p111 = scmp.eq.s32.totalorder %s20, 0
      %p112 = por %p110, %p111
      %s114 = sadd.s32 %s113, 1
      %p117 = scmp.eq.s32.totalorder %s14, 1
      %p118 = scmp.ne.s32.totalorder %s113, %s115
      %p119 = scmp.eq.s32.totalorder %s14, 0
      %p120 = por %p118, %p119
      %p121 = scmp.ne.s32.totalorder %s113, %s115
      %p122 = scmp.eq.s32.totalorder %s19, 1
      %p123 = por %p121, %p122
      %p124 = scmp.ne.s32.totalorder %s115, %s116
      %p125 = scmp.eq.s32.totalorder %s19, 0
      %p126 = por %p124, %p125
      %p127 = scmp.ne.s32.totalorder %s115, %s116
      %p128 = scmp.eq.s32.totalorder %s20, 1
      %p129 = por %p127, %p128
      %p131 = scmp.ne.s32.totalorder %s116, %s130
      %p132 = scmp.eq.s32.totalorder %s20, 0
      %p133 = por %p131, %p132
      %s134 = ssub.s32 %s21, %s33
      %s135 = ssub.s32 %s22, %s29
      %s136 = sor.u32 %s134, %s135
      %p137 = scmp.eq.s32.totalorder %s136, 0
      %s139 = sadd.s32 %s138, 1
      %s140 = scalar_select %p137, %s138, %s139
      %p143 = pneg %p137
      %p144 = scmp.eq.s32.totalorder %s14, 1
      %p145 = por %p143, %p144
      %p146 = scmp.ne.s32.totalorder %s138, %s141
      %p147 = scmp.eq.s32.totalorder %s14, 0
      %p148 = por %p146, %p147
      %p149 = scmp.ne.s32.totalorder %s138, %s141
      %p150 = scmp.eq.s32.totalorder %s19, 1
      %p151 = por %p149, %p150
      %p152 = scmp.ne.s32.totalorder %s141, %s142
      %p153 = scmp.eq.s32.totalorder %s19, 0
      %p154 = por %p152, %p153
      %p155 = scmp.ne.s32.totalorder %s141, %s142
      %p156 = scmp.eq.s32.totalorder %s20, 1
      %p157 = por %p155, %p156
      %p159 = scmp.ne.s32.totalorder %s142, %s158
      %p160 = scmp.eq.s32.totalorder %s20, 0
      %p161 = por %p159, %p160
      %p162 = scmp.le.s32.totalorder 1, %s14
      %p163 = scmp.lt.s32.totalorder %s14, 3
      %p164 = pnand %p162, %p163
      %p165 = pneg %p164
      // Predicated region
      $region9: #{tpu_custom_call.1} parent=5 // pred_check
        _
      $region10: #{tpu_custom_call.1} parent=5 // pred_check_branch
        %167 = sbr.rel (%p164) target = $region12
      $region11: #{tpu_custom_call.1} parent=5 // pred_region
        %s168 = ssub.s32 %s14, 1
        // Predicated region
        $region13: #{tpu_custom_call.1} parent=11 // pred_check
          %p169 = pneg %p105
        $region14: #{tpu_custom_call.1} parent=11 // pred_check_branch
          %171 = sbr.rel (%p169) target = $region16
        $region15: #{tpu_custom_call.1} parent=11 // pred_region
          %s173 = ssub.s32 1792, 1792
          %174 = vsyncadd [#allocation3], %s173
          %s175 = sshll.u32 [#allocation2], 4
          %s176 = int_to_ptr.vmem [resolvable:$true] %s175
          %181 = dma.hbm_to_vmem [thread:$0]  %s2, 1792, %s176, [#allocation3], 256, 256, 16
        $region16: #{tpu_custom_call.1} parent=11 // pred_fallthru
          _
        // Predicated region
        $region17: #{tpu_custom_call.1} parent=11 // pred_check
          %p182 = pneg %p126
        $region18: #{tpu_custom_call.1} parent=11 // pred_check_branch
          %184 = sbr.rel (%p182) target = $region20
        $region19: #{tpu_custom_call.1} parent=11 // pred_region
          _
        $region20: #{tpu_custom_call.1} parent=11 // pred_fallthru
          _
      $region12: #{tpu_custom_call.1} parent=5 // pred_fallthru
        _
      %p185 = scmp.lt.s32.totalorder %s14, 2
      // Predicated region
      $region21: #{tpu_custom_call.1} parent=5 // pred_check
        %p186 = pneg %p185
      $region22: #{tpu_custom_call.1} parent=5 // pred_check_branch
        %188 = sbr.rel (%p186) target = $region24
      $region23: #{tpu_custom_call.1} parent=5 // pred_region
        // Predicated region
        $region25: #{tpu_custom_call.1} parent=23 // pred_check
          %p189 = pneg %p48
        $region26: #{tpu_custom_call.1} parent=23 // pred_check_branch
          %191 = sbr.rel (%p189) target = $region28
        $region27: #{tpu_custom_call.1} parent=23 // pred_region
          %s192 = smul.u32 2, %s22
          %p193 = scmp.lt.s32.totalorder %s21, 1
          %s194 = scalar_select %p193, %s21, 1
          %p195 = scmp.lt.s32.totalorder %s192, 3
          %s196 = scalar_select %p195, %s192, 3
          %s197 = smul.addr %s194, 4
          %s198 = sadd.s32 %s196, %s197
          %s199 = smul.addr %s198, 4
          %s200 = scalar_lea.vmem %s0, %s199
          %s201 = smul.u32 2, %s22
        $region28: #{tpu_custom_call.1} parent=23 // pred_fallthru
          _
        // Predicated region
        $region29: #{tpu_custom_call.1} parent=23 // pred_check
          %p202 = pneg %p78
        $region30: #{tpu_custom_call.1} parent=23 // pred_check_branch
          %204 = sbr.rel (%p202) target = $region32
        $region31: #{tpu_custom_call.1} parent=23 // pred_region
          %s205 = sadd.s32 %s22, 1
          %s206 = smul.u32 2, %s205
          %p207 = scmp.lt.s32.totalorder %s21, 1
          %s208 = scalar_select %p207, %s21, 1
          %p209 = scmp.lt.s32.totalorder %s206, 3
          %s210 = scalar_select %p209, %s206, 3
          %s211 = smul.addr %s208, 4
          %s212 = sadd.s32 %s210, %s211
          %s213 = smul.addr %s212, 4
          %s214 = scalar_lea.vmem %s1, %s213
          %s215 = sadd.s32 %s22, 1
          %s216 = smul.u32 2, %s215
        $region32: #{tpu_custom_call.1} parent=23 // pred_fallthru
          _
      $region24: #{tpu_custom_call.1} parent=5 // pred_fallthru
        _
      %p217 = scmp.le.s32.totalorder 1, %s14
      %p218 = scmp.lt.s32.totalorder %s14, 3
      %p219 = pnand %p217, %p218
      %p220 = pneg %p219
      // Predicated region
      $region33: #{tpu_custom_call.1} parent=5 // pred_check
        _
      $region34: #{tpu_custom_call.1} parent=5 // pred_check_branch
        %222 = sbr.rel (%p219) target = $region36
      $region35: #{tpu_custom_call.1} parent=5 // pred_region
        %s223 = ssub.s32 %s14, 1
        // Predicated region
        $region37: #{tpu_custom_call.1} parent=35 // pred_check
          %p224 = pneg %p105
        $region38: #{tpu_custom_call.1} parent=35 // pred_check_branch
          %226 = sbr.rel (%p224) target = $region40
        $region39: #{tpu_custom_call.1} parent=35 // pred_region
          %227 = dma.done [#allocation3], 1792
        $region40: #{tpu_custom_call.1} parent=35 // pred_fallthru
          _
        %s228 = smul.u32 2, %s24
        %p229 = scmp.lt.s32.totalorder %s23, 1
        %s230 = scalar_select %p229, %s23, 1
        %p231 = scmp.lt.s32.totalorder %s228, 3
        %s232 = scalar_select %p231, %s228, 3
        %s233 = smul.addr %s230, 4
        %s234 = sadd.s32 %s232, %s233
        %s235 = smul.addr %s234, 4
        %s236 = scalar_lea.vmem %s0, %s235
        %p237 = pneg %p54
        %p238 = pneg %p51
        %s239 = sadd.s32 %s24, 1
        %s240 = smul.u32 2, %s239
        %p241 = scmp.lt.s32.totalorder %s23, 1
        %s242 = scalar_select %p241, %s23, 1
        %p243 = scmp.lt.s32.totalorder %s240, 3
        %s244 = scalar_select %p243, %s240, 3
        %s245 = smul.addr %s242, 4
        %s246 = sadd.s32 %s244, %s245
        %s247 = smul.addr %s246, 4
        %s248 = scalar_lea.vmem %s1, %s247
        %p249 = pneg %p84
        %p250 = pneg %p81
        %p251 = pneg %p105
        %p252 = pneg %p102
        %p253 = pneg %p126
        %p254 = pneg %p123
        %p255 = pneg %p154
        %p256 = pneg %p151
        %s257 = sand.u32 %s141, 1
        %s258 = scalar_lea.sflag [#allocation4], %s257
        %s259 = sand.u32 %s141, 1
        %s260 = smul.addr %s259, 64
        %s261 = scalar_lea.vmem [#allocation5], %s260
        %s262 = smul.u32 2, %s24
        %p263 = scmp.lt.s32.totalorder %s23, 1
        %s264 = scalar_select %p263, %s23, 1
        %p265 = scmp.lt.s32.totalorder %s262, 3
        %s266 = scalar_select %p265, %s262, 3
        %s267 = smul.addr %s264, 4
        %s268 = sadd.s32 %s266, %s267
        %s269 = smul.addr %s268, 4
        %s270 = scalar_lea.vmem %s0, %s269
        %s271 = smul.u32 2, %s24
        %s272 = sadd.s32 %s24, 1
        %s273 = smul.u32 2, %s272
        %p274 = scmp.lt.s32.totalorder %s23, 1
        %s275 = scalar_select %p274, %s23, 1
        %p276 = scmp.lt.s32.totalorder %s273, 3
        %s277 = scalar_select %p276, %s273, 3
        %s278 = smul.addr %s275, 4
        %s279 = sadd.s32 %s277, %s278
        %s280 = smul.addr %s279, 4
        %s281 = scalar_lea.vmem %s1, %s280
        %s282 = sadd.s32 %s24, 1
        %s283 = smul.u32 2, %s282
        %s284 = smul.u32 2, %s24
        %v286 = vld [vmem:[%s270] sm:$0xf]
        %v287 = vld [vmem:[%s270 + $0x4] sm:$0xf]
        %v288 = vld [vmem:[%s281] sm:$0xf]
        %v289 = vld [vmem:[%s281 + $0x4] sm:$0xf]
        %v292 = vunpack.c.l.b16 %v286
        %v293 = vunpack.c.l.b16 %v287
        %v294 = vpack.c.b16 %v293, %v292
        %v297 = vunpack.c.l.b16 %v288
        %v298 = vunpack.c.l.b16 %v289
        %v299 = vpack.c.b16 %v298, %v297
        %v300 = vld [vmem:[#allocation2] sm:$0xff]
        %v301 = vld [vmem:[#allocation2 + $0x8] sm:$0xff]
        %s302 = scalar_lea.vmem [#allocation2], 16
        %v303 = vld [vmem:[%s302] sm:$0xff]
        %v304 = vld [vmem:[%s302 + $0x8] sm:$0xff]
        %vm305 = vsmask.f32 7424
        %v307 = vshrl.u32 %v294, 16
        %v309 = vshll.u32 %v294, 16
        %v311 = vrot.slane %v309, 1
        %v312 = vor.u32 %v307, %v311
        %v314 = vshll.u32 %v299, 16
        %v316 = vrot.slane %v314, 1
        %v317 = vsel %vm305, %v312, %v316
        %v320 = vunpack.c.l.b16 %v303
        %v321 = vunpack.c.h.b16 %v303
        %v322 = vunpack.c.l.b16 %v304
        %v323 = vunpack.c.h.b16 %v304
        %v324 = vpack.c.b16 %v320, %v320
        %v325 = vpack.c.b16 %v321, %v321
        %v326 = vpack.c.b16 %v322, %v322
        %v327 = vpack.c.b16 %v323, %v323
        %vm328 = vcmask 64512
        %v330 = vsel %vm328, %v317, 0
        %vm332 = vcmask 1043456
        %v334 = vsel %vm332, %v324, 0
        %v337 = vsel %vm332, %v325, 0
        %v340 = vsel %vm332, %v326, 0
        %v343 = vsel %vm332, %v327, 0
        %345 = vmatprep.subr.bf16.mxu0 %v337
        %346 = vmatpush1.bf16.msra.mxu0 %v334
        %347 = vmatprep.subr.bf16.mxu0 0
        %348 = vmatpush1.bf16.msra.mxu0 0
        %349 = vmatprep.subr.bf16.mxu0 0
        %350 = vmatpush1.bf16.msra.mxu0 0
        %351 = vmatprep.subr.bf16.mxu0 0
        %352 = vmatpush1.bf16.msra.mxu0 0
        %353 = vmatprep.subr.bf16.mxu0 0
        %354 = vmatpush1.bf16.msra.mxu0 0
        %355 = vmatprep.subr.bf16.mxu0 0
        %356 = vmatpush1.bf16.msra.mxu0 0
        %357 = vmatprep.subr.bf16.mxu0 0
        %358 = vmatpush1.bf16.msra.mxu0 0
        %359 = vmatprep.subr.bf16.mxu0 0
        %360 = vmatpush1.bf16.msra.mxu0 0
        %361 = vmatprep.subr.bf16.mxu0 0
        %362 = vmatpush1.bf16.msra.mxu0 0
        %363 = vmatprep.subr.bf16.mxu0 0
        %364 = vmatpush1.bf16.msra.mxu0 0
        %365 = vmatprep.subr.bf16.mxu0 0
        %366 = vmatpush1.bf16.msra.mxu0 0
        %367 = vmatprep.subr.bf16.mxu0 0
        %368 = vmatpush1.bf16.msra.mxu0 0
        %369 = vmatprep.subr.bf16.mxu0 0
        %370 = vmatpush1.bf16.msra.mxu0 0
        %371 = vmatprep.subr.bf16.mxu0 0
        %372 = vmatpush1.bf16.msra.mxu0 0
        %373 = vmatprep.subr.bf16.mxu0 0
        %374 = vmatpush1.bf16.msra.mxu0 0
        %375 = vmatprep.subr.bf16.mxu0 0
        %376 = vmatpush1.bf16.msra.mxu0 0
        %377 = vmatprep.mubr.bf16.mxu0 0
        %378 = vmatmul.mubr.bf16.gmra.mrb[0].mxu0 %v330
        %v379 = vpop.f32.mrb[0].mxu0
        %v380 = vadd.f32 0.0, %v379
        %v381 = vpop.f32.mrb[0].mxu0
        %v382 = vadd.f32 0.0, %v381
        %v383 = vpop.f32.mrb[0].mxu0
        %v384 = vadd.f32 0.0, %v383
        %v385 = vpop.f32.mrb[0].mxu0
        %v386 = vadd.f32 0.0, %v385
        %387 = vdwg.mxu0
        %388 = vmatprep.subr.bf16.mxu0 %v343
        %389 = vmatpush1.bf16.msra.mxu0 %v340
        %390 = vmatprep.subr.bf16.mxu0 0
        %391 = vmatpush1.bf16.msra.mxu0 0
        %392 = vmatprep.subr.bf16.mxu0 0
        %393 = vmatpush1.bf16.msra.mxu0 0
        %394 = vmatprep.subr.bf16.mxu0 0
        %395 = vmatpush1.bf16.msra.mxu0 0
        %396 = vmatprep.subr.bf16.mxu0 0
        %397 = vmatpush1.bf16.msra.mxu0 0
        %398 = vmatprep.subr.bf16.mxu0 0
        %399 = vmatpush1.bf16.msra.mxu0 0
        %400 = vmatprep.subr.bf16.mxu0 0
        %401 = vmatpush1.bf16.msra.mxu0 0
        %402 = vmatprep.subr.bf16.mxu0 0
        %403 = vmatpush1.bf16.msra.mxu0 0
        %404 = vmatprep.subr.bf16.mxu0 0
        %405 = vmatpush1.bf16.msra.mxu0 0
        %406 = vmatprep.subr.bf16.mxu0 0
        %407 = vmatpush1.bf16.msra.mxu0 0
        %408 = vmatprep.subr.bf16.mxu0 0
        %409 = vmatpush1.bf16.msra.mxu0 0
        %410 = vmatprep.subr.bf16.mxu0 0
        %411 = vmatpush1.bf16.msra.mxu0 0
        %412 = vmatprep.subr.bf16.mxu0 0
        %413 = vmatpush1.bf16.msra.mxu0 0
        %414 = vmatprep.subr.bf16.mxu0 0
        %415 = vmatpush1.bf16.msra.mxu0 0
        %416 = vmatprep.subr.bf16.mxu0 0
        %417 = vmatpush1.bf16.msra.mxu0 0
        %418 = vmatprep.subr.bf16.mxu0 0
        %419 = vmatpush1.bf16.msra.mxu0 0
        %420 = vmatprep.mubr.bf16.mxu0 0
        %421 = vmatmul.mubr.bf16.gmra.mrb[0].mxu0 %v330
        %v422 = vpop.f32.mrb[0].mxu0
        %v423 = vadd.f32 0.0, %v422
        %v424 = vpop.f32.mrb[0].mxu0
        %v425 = vadd.f32 0.0, %v424
        %v426 = vpop.f32.mrb[0].mxu0
        %v427 = vadd.f32 0.0, %v426
        %v428 = vpop.f32.mrb[0].mxu0
        %v429 = vadd.f32 0.0, %v428
        %430 = vdwg.mxu0
        %v433 = vunpack.c.l.b16 %v300
        %v434 = vunpack.c.h.b16 %v300
        %v435 = vunpack.c.l.b16 %v301
        %v436 = vunpack.c.h.b16 %v301
        %v437 = vpack.c.b16 %v433, %v433
        %v438 = vpack.c.b16 %v434, %v434
        %v439 = vpack.c.b16 %v435, %v435
        %v440 = vpack.c.b16 %v436, %v436
        %v441 = vsel %vm328, %v294, 0
        %v444 = vsel %vm332, %v437, 0
        %v447 = vsel %vm332, %v438, 0
        %v450 = vsel %vm332, %v439, 0
        %v453 = vsel %vm332, %v440, 0
        %455 = vmatprep.subr.bf16.mxu0 %v447
        %456 = vmatpush1.bf16.msra.mxu0 %v444
        %457 = vmatprep.subr.bf16.mxu0 0
        %458 = vmatpush1.bf16.msra.mxu0 0
        %459 = vmatprep.subr.bf16.mxu0 0
        %460 = vmatpush1.bf16.msra.mxu0 0
        %461 = vmatprep.subr.bf16.mxu0 0
        %462 = vmatpush1.bf16.msra.mxu0 0
        %463 = vmatprep.subr.bf16.mxu0 0
        %464 = vmatpush1.bf16.msra.mxu0 0
        %465 = vmatprep.subr.bf16.mxu0 0
        %466 = vmatpush1.bf16.msra.mxu0 0
        %467 = vmatprep.subr.bf16.mxu0 0
        %468 = vmatpush1.bf16.msra.mxu0 0
        %469 = vmatprep.subr.bf16.mxu0 0
        %470 = vmatpush1.bf16.msra.mxu0 0
        %471 = vmatprep.subr.bf16.mxu0 0
        %472 = vmatpush1.bf16.msra.mxu0 0
        %473 = vmatprep.subr.bf16.mxu0 0
        %474 = vmatpush1.bf16.msra.mxu0 0
        %475 = vmatprep.subr.bf16.mxu0 0
        %476 = vmatpush1.bf16.msra.mxu0 0
        %477 = vmatprep.subr.bf16.mxu0 0
        %478 = vmatpush1.bf16.msra.mxu0 0
        %479 = vmatprep.subr.bf16.mxu0 0
        %480 = vmatpush1.bf16.msra.mxu0 0
        %481 = vmatprep.subr.bf16.mxu0 0
        %482 = vmatpush1.bf16.msra.mxu0 0
        %483 = vmatprep.subr.bf16.mxu0 0
        %484 = vmatpush1.bf16.msra.mxu0 0
        %485 = vmatprep.subr.bf16.mxu0 0
        %486 = vmatpush1.bf16.msra.mxu0 0
        %487 = vmatprep.mubr.bf16.mxu0 0
        %488 = vmatmul.mubr.bf16.gmra.mrb[0].mxu0 %v441
        %v489 = vpop.f32.mrb[0].mxu0
        %v490 = vadd.f32 %v380, %v489
        %v491 = vpop.f32.mrb[0].mxu0
        %v492 = vadd.f32 %v382, %v491
        %v493 = vpop.f32.mrb[0].mxu0
        %v494 = vadd.f32 %v384, %v493
        %v495 = vpop.f32.mrb[0].mxu0
        %v496 = vadd.f32 %v386, %v495
        %497 = vdwg.mxu0
        %498 = vmatprep.subr.bf16.mxu0 %v453
        %499 = vmatpush1.bf16.msra.mxu0 %v450
        %500 = vmatprep.subr.bf16.mxu0 0
        %501 = vmatpush1.bf16.msra.mxu0 0
        %502 = vmatprep.subr.bf16.mxu0 0
        %503 = vmatpush1.bf16.msra.mxu0 0
        %504 = vmatprep.subr.bf16.mxu0 0
        %505 = vmatpush1.bf16.msra.mxu0 0
        %506 = vmatprep.subr.bf16.mxu0 0
        %507 = vmatpush1.bf16.msra.mxu0 0
        %508 = vmatprep.subr.bf16.mxu0 0
        %509 = vmatpush1.bf16.msra.mxu0 0
        %510 = vmatprep.subr.bf16.mxu0 0
        %511 = vmatpush1.bf16.msra.mxu0 0
        %512 = vmatprep.subr.bf16.mxu0 0
        %513 = vmatpush1.bf16.msra.mxu0 0
        %514 = vmatprep.subr.bf16.mxu0 0
        %515 = vmatpush1.bf16.msra.mxu0 0
        %516 = vmatprep.subr.bf16.mxu0 0
        %517 = vmatpush1.bf16.msra.mxu0 0
        %518 = vmatprep.subr.bf16.mxu0 0
        %519 = vmatpush1.bf16.msra.mxu0 0
        %520 = vmatprep.subr.bf16.mxu0 0
        %521 = vmatpush1.bf16.msra.mxu0 0
        %522 = vmatprep.subr.bf16.mxu0 0
        %523 = vmatpush1.bf16.msra.mxu0 0
        %524 = vmatprep.subr.bf16.mxu0 0
        %525 = vmatpush1.bf16.msra.mxu0 0
        %526 = vmatprep.subr.bf16.mxu0 0
        %527 = vmatpush1.bf16.msra.mxu0 0
        %528 = vmatprep.subr.bf16.mxu0 0
        %529 = vmatpush1.bf16.msra.mxu0 0
        %530 = vmatprep.mubr.bf16.mxu0 0
        %531 = vmatmul.mubr.bf16.gmra.mrb[0].mxu0 %v441
        %v532 = vpop.f32.mrb[0].mxu0
        %v533 = vadd.f32 %v423, %v532
        %v534 = vpop.f32.mrb[0].mxu0
        %v535 = vadd.f32 %v425, %v534
        %v536 = vpop.f32.mrb[0].mxu0
        %v537 = vadd.f32 %v427, %v536
        %v538 = vpop.f32.mrb[0].mxu0
        %v539 = vadd.f32 %v429, %v538
        %540 = vdwg.mxu0
        %s541 = scalar_lea.vmem [#allocation2], 32
        %v542 = vld [vmem:[%s541] sm:$0xff]
        %v543 = vld [vmem:[%s541 + $0x8] sm:$0xff]
        %vm544 = vcmask 1046528
        %v545 = vrot.slane %v294, 1
        %v546 = vrot.slane %v299, 1
        %v547 = vsel %vm544, %v545, %v546
        %v550 = vunpack.c.l.b16 %v542
        %v551 = vunpack.c.h.b16 %v542
        %v552 = vunpack.c.l.b16 %v543
        %v553 = vunpack.c.h.b16 %v543
        %v554 = vpack.c.b16 %v550, %v550
        %v555 = vpack.c.b16 %v551, %v551
        %v556 = vpack.c.b16 %v552, %v552
        %v557 = vpack.c.b16 %v553, %v553
        %v559 = vsel %vm328, %v547, 0
        %v562 = vsel %vm332, %v554, 0
        %v565 = vsel %vm332, %v555, 0
        %v568 = vsel %vm332, %v556, 0
        %v571 = vsel %vm332, %v557, 0
        %573 = vmatprep.subr.bf16.mxu0 %v565
        %574 = vmatpush1.bf16.msra.mxu0 %v562
        %575 = vmatprep.subr.bf16.mxu0 0
        %576 = vmatpush1.bf16.msra.mxu0 0
        %577 = vmatprep.subr.bf16.mxu0 0
        %578 = vmatpush1.bf16.msra.mxu0 0
        %579 = vmatprep.subr.bf16.mxu0 0
        %580 = vmatpush1.bf16.msra.mxu0 0
        %581 = vmatprep.subr.bf16.mxu0 0
        %582 = vmatpush1.bf16.msra.mxu0 0
        %583 = vmatprep.subr.bf16.mxu0 0
        %584 = vmatpush1.bf16.msra.mxu0 0
        %585 = vmatprep.subr.bf16.mxu0 0
        %586 = vmatpush1.bf16.msra.mxu0 0
        %587 = vmatprep.subr.bf16.mxu0 0
        %588 = vmatpush1.bf16.msra.mxu0 0
        %589 = vmatprep.subr.bf16.mxu0 0
        %590 = vmatpush1.bf16.msra.mxu0 0
        %591 = vmatprep.subr.bf16.mxu0 0
        %592 = vmatpush1.bf16.msra.mxu0 0
        %593 = vmatprep.subr.bf16.mxu0 0
        %594 = vmatpush1.bf16.msra.mxu0 0
        %595 = vmatprep.subr.bf16.mxu0 0
        %596 = vmatpush1.bf16.msra.mxu0 0
        %597 = vmatprep.subr.bf16.mxu0 0
        %598 = vmatpush1.bf16.msra.mxu0 0
        %599 = vmatprep.subr.bf16.mxu0 0
        %600 = vmatpush1.bf16.msra.mxu0 0
        %601 = vmatprep.subr.bf16.mxu0 0
        %602 = vmatpush1.bf16.msra.mxu0 0
        %603 = vmatprep.subr.bf16.mxu0 0
        %604 = vmatpush1.bf16.msra.mxu0 0
        %605 = vmatprep.mubr.bf16.mxu0 0
        %606 = vmatmul.mubr.bf16.gmra.mrb[0].mxu0 %v559
        %v607 = vpop.f32.mrb[0].mxu0
        %v608 = vadd.f32 0.0, %v607
        %v609 = vpop.f32.mrb[0].mxu0
        %v610 = vadd.f32 0.0, %v609
        %v611 = vpop.f32.mrb[0].mxu0
        %v612 = vadd.f32 0.0, %v611
        %v613 = vpop.f32.mrb[0].mxu0
        %v614 = vadd.f32 0.0, %v613
        %615 = vdwg.mxu0
        %616 = vmatprep.subr.bf16.mxu0 %v571
        %617 = vmatpush1.bf16.msra.mxu0 %v568
        %618 = vmatprep.subr.bf16.mxu0 0
        %619 = vmatpush1.bf16.msra.mxu0 0
        %620 = vmatprep.subr.bf16.mxu0 0
        %621 = vmatpush1.bf16.msra.mxu0 0
        %622 = vmatprep.subr.bf16.mxu0 0
        %623 = vmatpush1.bf16.msra.mxu0 0
        %624 = vmatprep.subr.bf16.mxu0 0
        %625 = vmatpush1.bf16.msra.mxu0 0
        %626 = vmatprep.subr.bf16.mxu0 0
        %627 = vmatpush1.bf16.msra.mxu0 0
        %628 = vmatprep.subr.bf16.mxu0 0
        %629 = vmatpush1.bf16.msra.mxu0 0
        %630 = vmatprep.subr.bf16.mxu0 0
        %631 = vmatpush1.bf16.msra.mxu0 0
        %632 = vmatprep.subr.bf16.mxu0 0
        %633 = vmatpush1.bf16.msra.mxu0 0
        %634 = vmatprep.subr.bf16.mxu0 0
        %635 = vmatpush1.bf16.msra.mxu0 0
        %636 = vmatprep.subr.bf16.mxu0 0
        %637 = vmatpush1.bf16.msra.mxu0 0
        %638 = vmatprep.subr.bf16.mxu0 0
        %639 = vmatpush1.bf16.msra.mxu0 0
        %640 = vmatprep.subr.bf16.mxu0 0
        %641 = vmatpush1.bf16.msra.mxu0 0
        %642 = vmatprep.subr.bf16.mxu0 0
        %643 = vmatpush1.bf16.msra.mxu0 0
        %644 = vmatprep.subr.bf16.mxu0 0
        %645 = vmatpush1.bf16.msra.mxu0 0
        %646 = vmatprep.subr.bf16.mxu0 0
        %647 = vmatpush1.bf16.msra.mxu0 0
        %648 = vmatprep.mubr.bf16.mxu0 0
        %649 = vmatmul.mubr.bf16.gmra.mrb[0].mxu0 %v559
        %v650 = vpop.f32.mrb[0].mxu0
        %v651 = vadd.f32 0.0, %v650
        %v652 = vpop.f32.mrb[0].mxu0
        %v653 = vadd.f32 0.0, %v652
        %v654 = vpop.f32.mrb[0].mxu0
        %v655 = vadd.f32 0.0, %v654
        %v656 = vpop.f32.mrb[0].mxu0
        %v657 = vadd.f32 0.0, %v656
        %658 = vdwg.mxu0
        %v659 = vadd.f32 %v490, %v608
        %v660 = vadd.f32 %v492, %v610
        %v661 = vadd.f32 %v533, %v651
        %v662 = vadd.f32 %v535, %v653
        %v663 = vadd.f32 %v494, %v612
        %v664 = vadd.f32 %v496, %v614
        %v665 = vadd.f32 %v537, %v655
        %v666 = vadd.f32 %v539, %v657
        %s667 = scalar_lea.vmem [#allocation2], 48
        %v668 = vld [vmem:[%s667] sm:$0xff]
        %v669 = vld [vmem:[%s667 + $0x8] sm:$0xff]
        %vm670 = vsmask.f32 6400
        %v671 = vrot.slane %v307, 1
        %v672 = vrot.slane %v309, 2
        %v673 = vor.u32 %v671, %v672
        %v674 = vshrl.u32 %v299, 16
        %v676 = vrot.slane %v674, 1
        %v677 = vrot.slane %v314, 2
        %v678 = vor.u32 %v676, %v677
        %v679 = vsel %vm670, %v673, %v678
        %v682 = vunpack.c.l.b16 %v668
        %v683 = vunpack.c.h.b16 %v668
        %v684 = vunpack.c.l.b16 %v669
        %v685 = vunpack.c.h.b16 %v669
        %v686 = vpack.c.b16 %v682, %v682
        %v687 = vpack.c.b16 %v683, %v683
        %v688 = vpack.c.b16 %v684, %v684
        %v689 = vpack.c.b16 %v685, %v685
        %v691 = vsel %vm328, %v679, 0
        %v694 = vsel %vm332, %v686, 0
        %v697 = vsel %vm332, %v687, 0
        %v700 = vsel %vm332, %v688, 0
        %v703 = vsel %vm332, %v689, 0
        %705 = vmatprep.subr.bf16.mxu0 %v697
        %706 = vmatpush1.bf16.msra.mxu0 %v694
        %707 = vmatprep.subr.bf16.mxu0 0
        %708 = vmatpush1.bf16.msra.mxu0 0
        %709 = vmatprep.subr.bf16.mxu0 0
        %710 = vmatpush1.bf16.msra.mxu0 0
        %711 = vmatprep.subr.bf16.mxu0 0
        %712 = vmatpush1.bf16.msra.mxu0 0
        %713 = vmatprep.subr.bf16.mxu0 0
        %714 = vmatpush1.bf16.msra.mxu0 0
        %715 = vmatprep.subr.bf16.mxu0 0
        %716 = vmatpush1.bf16.msra.mxu0 0
        %717 = vmatprep.subr.bf16.mxu0 0
        %718 = vmatpush1.bf16.msra.mxu0 0
        %719 = vmatprep.subr.bf16.mxu0 0
        %720 = vmatpush1.bf16.msra.mxu0 0
        %721 = vmatprep.subr.bf16.mxu0 0
        %722 = vmatpush1.bf16.msra.mxu0 0
        %723 = vmatprep.subr.bf16.mxu0 0
        %724 = vmatpush1.bf16.msra.mxu0 0
        %725 = vmatprep.subr.bf16.mxu0 0
        %726 = vmatpush1.bf16.msra.mxu0 0
        %727 = vmatprep.subr.bf16.mxu0 0
        %728 = vmatpush1.bf16.msra.mxu0 0
        %729 = vmatprep.subr.bf16.mxu0 0
        %730 = vmatpush1.bf16.msra.mxu0 0
        %731 = vmatprep.subr.bf16.mxu0 0
        %732 = vmatpush1.bf16.msra.mxu0 0
        %733 = vmatprep.subr.bf16.mxu0 0
        %734 = vmatpush1.bf16.msra.mxu0 0
        %735 = vmatprep.subr.bf16.mxu0 0
        %736 = vmatpush1.bf16.msra.mxu0 0
        %737 = vmatprep.mubr.bf16.mxu0 0
        %738 = vmatmul.mubr.bf16.gmra.mrb[0].mxu0 %v691
        %v739 = vpop.f32.mrb[0].mxu0
        %v740 = vadd.f32 0.0, %v739
        %v741 = vpop.f32.mrb[0].mxu0
        %v742 = vadd.f32 0.0, %v741
        %v743 = vpop.f32.mrb[0].mxu0
        %v744 = vadd.f32 0.0, %v743
        %v745 = vpop.f32.mrb[0].mxu0
        %v746 = vadd.f32 0.0, %v745
        %747 = vdwg.mxu0
        %748 = vmatprep.subr.bf16.mxu0 %v703
        %749 = vmatpush1.bf16.msra.mxu0 %v700
        %750 = vmatprep.subr.bf16.mxu0 0
        %751 = vmatpush1.bf16.msra.mxu0 0
        %752 = vmatprep.subr.bf16.mxu0 0
        %753 = vmatpush1.bf16.msra.mxu0 0
        %754 = vmatprep.subr.bf16.mxu0 0
        %755 = vmatpush1.bf16.msra.mxu0 0
        %756 = vmatprep.subr.bf16.mxu0 0
        %757 = vmatpush1.bf16.msra.mxu0 0
        %758 = vmatprep.subr.bf16.mxu0 0
        %759 = vmatpush1.bf16.msra.mxu0 0
        %760 = vmatprep.subr.bf16.mxu0 0
        %761 = vmatpush1.bf16.msra.mxu0 0
        %762 = vmatprep.subr.bf16.mxu0 0
        %763 = vmatpush1.bf16.msra.mxu0 0
        %764 = vmatprep.subr.bf16.mxu0 0
        %765 = vmatpush1.bf16.msra.mxu0 0
        %766 = vmatprep.subr.bf16.mxu0 0
        %767 = vmatpush1.bf16.msra.mxu0 0
        %768 = vmatprep.subr.bf16.mxu0 0
        %769 = vmatpush1.bf16.msra.mxu0 0
        %770 = vmatprep.subr.bf16.mxu0 0
        %771 = vmatpush1.bf16.msra.mxu0 0
        %772 = vmatprep.subr.bf16.mxu0 0
        %773 = vmatpush1.bf16.msra.mxu0 0
        %774 = vmatprep.subr.bf16.mxu0 0
        %775 = vmatpush1.bf16.msra.mxu0 0
        %776 = vmatprep.subr.bf16.mxu0 0
        %777 = vmatpush1.bf16.msra.mxu0 0
        %778 = vmatprep.subr.bf16.mxu0 0
        %779 = vmatpush1.bf16.msra.mxu0 0
        %780 = vmatprep.mubr.bf16.mxu0 0
        %781 = vmatmul.mubr.bf16.gmra.mrb[0].mxu0 %v691
        %v782 = vpop.f32.mrb[0].mxu0
        %v783 = vadd.f32 0.0, %v782
        %v784 = vpop.f32.mrb[0].mxu0
        %v785 = vadd.f32 0.0, %v784
        %v786 = vpop.f32.mrb[0].mxu0
        %v787 = vadd.f32 0.0, %v786
        %v788 = vpop.f32.mrb[0].mxu0
        %v789 = vadd.f32 0.0, %v788
        %790 = vdwg.mxu0
        %v791 = vadd.f32 %v659, %v740
        %v792 = vadd.f32 %v660, %v742
        %v793 = vadd.f32 %v661, %v783
        %v794 = vadd.f32 %v662, %v785
        %v795 = vadd.f32 %v663, %v744
        %v796 = vadd.f32 %v664, %v746
        %v797 = vadd.f32 %v665, %v787
        %v798 = vadd.f32 %v666, %v789
        %s799 = scalar_lea.vmem [#allocation2], 64
        %v800 = vld [vmem:[%s799] sm:$0xff]
        %v801 = vld [vmem:[%s799 + $0x8] sm:$0xff]
        %vm802 = vcmask 1045504
        %v803 = vrot.slane %v294, 2
        %v804 = vrot.slane %v299, 2
        %v805 = vsel %vm802, %v803, %v804
        %v808 = vunpack.c.l.b16 %v800
        %v809 = vunpack.c.h.b16 %v800
        %v810 = vunpack.c.l.b16 %v801
        %v811 = vunpack.c.h.b16 %v801
        %v812 = vpack.c.b16 %v808, %v808
        %v813 = vpack.c.b16 %v809, %v809
        %v814 = vpack.c.b16 %v810, %v810
        %v815 = vpack.c.b16 %v811, %v811
        %v817 = vsel %vm328, %v805, 0
        %v820 = vsel %vm332, %v812, 0
        %v823 = vsel %vm332, %v813, 0
        %v826 = vsel %vm332, %v814, 0
        %v829 = vsel %vm332, %v815, 0
        %831 = vmatprep.subr.bf16.mxu0 %v823
        %832 = vmatpush1.bf16.msra.mxu0 %v820
        %833 = vmatprep.subr.bf16.mxu0 0
        %834 = vmatpush1.bf16.msra.mxu0 0
        %835 = vmatprep.subr.bf16.mxu0 0
        %836 = vmatpush1.bf16.msra.mxu0 0
        %837 = vmatprep.subr.bf16.mxu0 0
        %838 = vmatpush1.bf16.msra.mxu0 0
        %839 = vmatprep.subr.bf16.mxu0 0
        %840 = vmatpush1.bf16.msra.mxu0 0
        %841 = vmatprep.subr.bf16.mxu0 0
        %842 = vmatpush1.bf16.msra.mxu0 0
        %843 = vmatprep.subr.bf16.mxu0 0
        %844 = vmatpush1.bf16.msra.mxu0 0
        %845 = vmatprep.subr.bf16.mxu0 0
        %846 = vmatpush1.bf16.msra.mxu0 0
        %847 = vmatprep.subr.bf16.mxu0 0
        %848 = vmatpush1.bf16.msra.mxu0 0
        %849 = vmatprep.subr.bf16.mxu0 0
        %850 = vmatpush1.bf16.msra.mxu0 0
        %851 = vmatprep.subr.bf16.mxu0 0
        %852 = vmatpush1.bf16.msra.mxu0 0
        %853 = vmatprep.subr.bf16.mxu0 0
        %854 = vmatpush1.bf16.msra.mxu0 0
        %855 = vmatprep.subr.bf16.mxu0 0
        %856 = vmatpush1.bf16.msra.mxu0 0
        %857 = vmatprep.subr.bf16.mxu0 0
        %858 = vmatpush1.bf16.msra.mxu0 0
        %859 = vmatprep.subr.bf16.mxu0 0
        %860 = vmatpush1.bf16.msra.mxu0 0
        %861 = vmatprep.subr.bf16.mxu0 0
        %862 = vmatpush1.bf16.msra.mxu0 0
        %863 = vmatprep.mubr.bf16.mxu0 0
        %864 = vmatmul.mubr.bf16.gmra.mrb[0].mxu0 %v817
        %v865 = vpop.f32.mrb[0].mxu0
        %v866 = vadd.f32 0.0, %v865
        %v867 = vpop.f32.mrb[0].mxu0
        %v868 = vadd.f32 0.0, %v867
        %v869 = vpop.f32.mrb[0].mxu0
        %v870 = vadd.f32 0.0, %v869
        %v871 = vpop.f32.mrb[0].mxu0
        %v872 = vadd.f32 0.0, %v871
        %873 = vdwg.mxu0
        %874 = vmatprep.subr.bf16.mxu0 %v829
        %875 = vmatpush1.bf16.msra.mxu0 %v826
        %876 = vmatprep.subr.bf16.mxu0 0
        %877 = vmatpush1.bf16.msra.mxu0 0
        %878 = vmatprep.subr.bf16.mxu0 0
        %879 = vmatpush1.bf16.msra.mxu0 0
        %880 = vmatprep.subr.bf16.mxu0 0
        %881 = vmatpush1.bf16.msra.mxu0 0
        %882 = vmatprep.subr.bf16.mxu0 0
        %883 = vmatpush1.bf16.msra.mxu0 0
        %884 = vmatprep.subr.bf16.mxu0 0
        %885 = vmatpush1.bf16.msra.mxu0 0
        %886 = vmatprep.subr.bf16.mxu0 0
        %887 = vmatpush1.bf16.msra.mxu0 0
        %888 = vmatprep.subr.bf16.mxu0 0
        %889 = vmatpush1.bf16.msra.mxu0 0
        %890 = vmatprep.subr.bf16.mxu0 0
        %891 = vmatpush1.bf16.msra.mxu0 0
        %892 = vmatprep.subr.bf16.mxu0 0
        %893 = vmatpush1.bf16.msra.mxu0 0
        %894 = vmatprep.subr.bf16.mxu0 0
        %895 = vmatpush1.bf16.msra.mxu0 0
        %896 = vmatprep.subr.bf16.mxu0 0
        %897 = vmatpush1.bf16.msra.mxu0 0
        %898 = vmatprep.subr.bf16.mxu0 0
        %899 = vmatpush1.bf16.msra.mxu0 0
        %900 = vmatprep.subr.bf16.mxu0 0
        %901 = vmatpush1.bf16.msra.mxu0 0
        %902 = vmatprep.subr.bf16.mxu0 0
        %903 = vmatpush1.bf16.msra.mxu0 0
        %904 = vmatprep.subr.bf16.mxu0 0
        %905 = vmatpush1.bf16.msra.mxu0 0
        %906 = vmatprep.mubr.bf16.mxu0 0
        %907 = vmatmul.mubr.bf16.gmra.mrb[0].mxu0 %v817
        %v908 = vpop.f32.mrb[0].mxu0
        %v909 = vadd.f32 0.0, %v908
        %v910 = vpop.f32.mrb[0].mxu0
        %v911 = vadd.f32 0.0, %v910
        %v912 = vpop.f32.mrb[0].mxu0
        %v913 = vadd.f32 0.0, %v912
        %v914 = vpop.f32.mrb[0].mxu0
        %v915 = vadd.f32 0.0, %v914
        %916 = vdwg.mxu0
        %v917 = vadd.f32 %v791, %v866
        %v918 = vadd.f32 %v792, %v868
        %v919 = vadd.f32 %v793, %v909
        %v920 = vadd.f32 %v794, %v911
        %v921 = vadd.f32 %v795, %v870
        %v922 = vadd.f32 %v796, %v872
        %v923 = vadd.f32 %v797, %v913
        %v924 = vadd.f32 %v798, %v915
        %s925 = scalar_lea.vmem [#allocation2], 80
        %v926 = vld [vmem:[%s925] sm:$0xff]
        %v927 = vld [vmem:[%s925 + $0x8] sm:$0xff]
        %vm928 = vsmask.f32 5376
        %v929 = vrot.slane %v307, 2
        %v930 = vrot.slane %v309, 3
        %v931 = vor.u32 %v929, %v930
        %v932 = vrot.slane %v674, 2
        %v933 = vrot.slane %v314, 3
        %v934 = vor.u32 %v932, %v933
        %v935 = vsel %vm928, %v931, %v934
        %v938 = vunpack.c.l.b16 %v926
        %v939 = vunpack.c.h.b16 %v926
        %v940 = vunpack.c.l.b16 %v927
        %v941 = vunpack.c.h.b16 %v927
        %v942 = vpack.c.b16 %v938, %v938
        %v943 = vpack.c.b16 %v939, %v939
        %v944 = vpack.c.b16 %v940, %v940
        %v945 = vpack.c.b16 %v941, %v941
        %v947 = vsel %vm328, %v935, 0
        %v950 = vsel %vm332, %v942, 0
        %v953 = vsel %vm332, %v943, 0
        %v956 = vsel %vm332, %v944, 0
        %v959 = vsel %vm332, %v945, 0
        %961 = vmatprep.subr.bf16.mxu0 %v953
        %962 = vmatpush1.bf16.msra.mxu0 %v950
        %963 = vmatprep.subr.bf16.mxu0 0
        %964 = vmatpush1.bf16.msra.mxu0 0
        %965 = vmatprep.subr.bf16.mxu0 0
        %966 = vmatpush1.bf16.msra.mxu0 0
        %967 = vmatprep.subr.bf16.mxu0 0
        %968 = vmatpush1.bf16.msra.mxu0 0
        %969 = vmatprep.subr.bf16.mxu0 0
        %970 = vmatpush1.bf16.msra.mxu0 0
        %971 = vmatprep.subr.bf16.mxu0 0
        %972 = vmatpush1.bf16.msra.mxu0 0
        %973 = vmatprep.subr.bf16.mxu0 0
        %974 = vmatpush1.bf16.msra.mxu0 0
        %975 = vmatprep.subr.bf16.mxu0 0
        %976 = vmatpush1.bf16.msra.mxu0 0
        %977 = vmatprep.subr.bf16.mxu0 0
        %978 = vmatpush1.bf16.msra.mxu0 0
        %979 = vmatprep.subr.bf16.mxu0 0
        %980 = vmatpush1.bf16.msra.mxu0 0
        %981 = vmatprep.subr.bf16.mxu0 0
        %982 = vmatpush1.bf16.msra.mxu0 0
        %983 = vmatprep.subr.bf16.mxu0 0
        %984 = vmatpush1.bf16.msra.mxu0 0
        %985 = vmatprep.subr.bf16.mxu0 0
        %986 = vmatpush1.bf16.msra.mxu0 0
        %987 = vmatprep.subr.bf16.mxu0 0
        %988 = vmatpush1.bf16.msra.mxu0 0
        %989 = vmatprep.subr.bf16.mxu0 0
        %990 = vmatpush1.bf16.msra.mxu0 0
        %991 = vmatprep.subr.bf16.mxu0 0
        %992 = vmatpush1.bf16.msra.mxu0 0
        %993 = vmatprep.mubr.bf16.mxu0 0
        %994 = vmatmul.mubr.bf16.gmra.mrb[0].mxu0 %v947
        %v995 = vpop.f32.mrb[0].mxu0
        %v996 = vadd.f32 0.0, %v995
        %v997 = vpop.f32.mrb[0].mxu0
        %v998 = vadd.f32 0.0, %v997
        %v999 = vpop.f32.mrb[0].mxu0
        %v1000 = vadd.f32 0.0, %v999
        %v1001 = vpop.f32.mrb[0].mxu0
        %v1002 = vadd.f32 0.0, %v1001
        %1003 = vdwg.mxu0
        %1004 = vmatprep.subr.bf16.mxu0 %v959
        %1005 = vmatpush1.bf16.msra.mxu0 %v956
        %1006 = vmatprep.subr.bf16.mxu0 0
        %1007 = vmatpush1.bf16.msra.mxu0 0
        %1008 = vmatprep.subr.bf16.mxu0 0
        %1009 = vmatpush1.bf16.msra.mxu0 0
        %1010 = vmatprep.subr.bf16.mxu0 0
        %1011 = vmatpush1.bf16.msra.mxu0 0
        %1012 = vmatprep.subr.bf16.mxu0 0
        %1013 = vmatpush1.bf16.msra.mxu0 0
        %1014 = vmatprep.subr.bf16.mxu0 0
        %1015 = vmatpush1.bf16.msra.mxu0 0
        %1016 = vmatprep.subr.bf16.mxu0 0
        %1017 = vmatpush1.bf16.msra.mxu0 0
        %1018 = vmatprep.subr.bf16.mxu0 0
        %1019 = vmatpush1.bf16.msra.mxu0 0
        %1020 = vmatprep.subr.bf16.mxu0 0
        %1021 = vmatpush1.bf16.msra.mxu0 0
        %1022 = vmatprep.subr.bf16.mxu0 0
        %1023 = vmatpush1.bf16.msra.mxu0 0
        %1024 = vmatprep.subr.bf16.mxu0 0
        %1025 = vmatpush1.bf16.msra.mxu0 0
        %1026 = vmatprep.subr.bf16.mxu0 0
        %1027 = vmatpush1.bf16.msra.mxu0 0
        %1028 = vmatprep.subr.bf16.mxu0 0
        %1029 = vmatpush1.bf16.msra.mxu0 0
        %1030 = vmatprep.subr.bf16.mxu0 0
        %1031 = vmatpush1.bf16.msra.mxu0 0
        %1032 = vmatprep.subr.bf16.mxu0 0
        %1033 = vmatpush1.bf16.msra.mxu0 0
        %1034 = vmatprep.subr.bf16.mxu0 0
        %1035 = vmatpush1.bf16.msra.mxu0 0
        %1036 = vmatprep.mubr.bf16.mxu0 0
        %1037 = vmatmul.mubr.bf16.gmra.mrb[0].mxu0 %v947
        %v1038 = vpop.f32.mrb[0].mxu0
        %v1039 = vadd.f32 0.0, %v1038
        %v1040 = vpop.f32.mrb[0].mxu0
        %v1041 = vadd.f32 0.0, %v1040
        %v1042 = vpop.f32.mrb[0].mxu0
        %v1043 = vadd.f32 0.0, %v1042
        %v1044 = vpop.f32.mrb[0].mxu0
        %v1045 = vadd.f32 0.0, %v1044
        %1046 = vdwg.mxu0
        %v1047 = vadd.f32 %v917, %v996
        %v1048 = vadd.f32 %v918, %v998
        %v1049 = vadd.f32 %v919, %v1039
        %v1050 = vadd.f32 %v920, %v1041
        %v1051 = vadd.f32 %v921, %v1000
        %v1052 = vadd.f32 %v922, %v1002
        %v1053 = vadd.f32 %v923, %v1043
        %v1054 = vadd.f32 %v924, %v1045
        %s1055 = scalar_lea.vmem [#allocation2], 96
        %v1056 = vld [vmem:[%s1055] sm:$0xff]
        %v1057 = vld [vmem:[%s1055 + $0x8] sm:$0xff]
        %vm1058 = vcmask 1044480
        %v1059 = vrot.slane %v294, 3
        %v1060 = vrot.slane %v299, 3
        %v1061 = vsel %vm1058, %v1059, %v1060
        %v1064 = vunpack.c.l.b16 %v1056
        %v1065 = vunpack.c.h.b16 %v1056
        %v1066 = vunpack.c.l.b16 %v1057
        %v1067 = vunpack.c.h.b16 %v1057
        %v1068 = vpack.c.b16 %v1064, %v1064
        %v1069 = vpack.c.b16 %v1065, %v1065
        %v1070 = vpack.c.b16 %v1066, %v1066
        %v1071 = vpack.c.b16 %v1067, %v1067
        %v1073 = vsel %vm328, %v1061, 0
        %v1076 = vsel %vm332, %v1068, 0
        %v1079 = vsel %vm332, %v1069, 0
        %v1082 = vsel %vm332, %v1070, 0
        %v1085 = vsel %vm332, %v1071, 0
        %1087 = vmatprep.subr.bf16.mxu0 %v1079
        %1088 = vmatpush1.bf16.msra.mxu0 %v1076
        %1089 = vmatprep.subr.bf16.mxu0 0
        %1090 = vmatpush1.bf16.msra.mxu0 0
        %1091 = vmatprep.subr.bf16.mxu0 0
        %1092 = vmatpush1.bf16.msra.mxu0 0
        %1093 = vmatprep.subr.bf16.mxu0 0
        %1094 = vmatpush1.bf16.msra.mxu0 0
        %1095 = vmatprep.subr.bf16.mxu0 0
        %1096 = vmatpush1.bf16.msra.mxu0 0
        %1097 = vmatprep.subr.bf16.mxu0 0
        %1098 = vmatpush1.bf16.msra.mxu0 0
        %1099 = vmatprep.subr.bf16.mxu0 0
        %1100 = vmatpush1.bf16.msra.mxu0 0
        %1101 = vmatprep.subr.bf16.mxu0 0
        %1102 = vmatpush1.bf16.msra.mxu0 0
        %1103 = vmatprep.subr.bf16.mxu0 0
        %1104 = vmatpush1.bf16.msra.mxu0 0
        %1105 = vmatprep.subr.bf16.mxu0 0
        %1106 = vmatpush1.bf16.msra.mxu0 0
        %1107 = vmatprep.subr.bf16.mxu0 0
        %1108 = vmatpush1.bf16.msra.mxu0 0
        %1109 = vmatprep.subr.bf16.mxu0 0
        %1110 = vmatpush1.bf16.msra.mxu0 0
        %1111 = vmatprep.subr.bf16.mxu0 0
        %1112 = vmatpush1.bf16.msra.mxu0 0
        %1113 = vmatprep.subr.bf16.mxu0 0
        %1114 = vmatpush1.bf16.msra.mxu0 0
        %1115 = vmatprep.subr.bf16.mxu0 0
        %1116 = vmatpush1.bf16.msra.mxu0 0
        %1117 = vmatprep.subr.bf16.mxu0 0
        %1118 = vmatpush1.bf16.msra.mxu0 0
        %1119 = vmatprep.mubr.bf16.mxu0 0
        %1120 = vmatmul.mubr.bf16.gmra.mrb[0].mxu0 %v1073
        %v1121 = vpop.f32.mrb[0].mxu0
        %v1122 = vadd.f32 0.0, %v1121
        %v1123 = vpop.f32.mrb[0].mxu0
        %v1124 = vadd.f32 0.0, %v1123
        %v1125 = vpop.f32.mrb[0].mxu0
        %v1126 = vadd.f32 0.0, %v1125
        %v1127 = vpop.f32.mrb[0].mxu0
        %v1128 = vadd.f32 0.0, %v1127
        %1129 = vdwg.mxu0
        %1130 = vmatprep.subr.bf16.mxu0 %v1085
        %1131 = vmatpush1.bf16.msra.mxu0 %v1082
        %1132 = vmatprep.subr.bf16.mxu0 0
        %1133 = vmatpush1.bf16.msra.mxu0 0
        %1134 = vmatprep.subr.bf16.mxu0 0
        %1135 = vmatpush1.bf16.msra.mxu0 0
        %1136 = vmatprep.subr.bf16.mxu0 0
        %1137 = vmatpush1.bf16.msra.mxu0 0
        %1138 = vmatprep.subr.bf16.mxu0 0
        %1139 = vmatpush1.bf16.msra.mxu0 0
        %1140 = vmatprep.subr.bf16.mxu0 0
        %1141 = vmatpush1.bf16.msra.mxu0 0
        %1142 = vmatprep.subr.bf16.mxu0 0
        %1143 = vmatpush1.bf16.msra.mxu0 0
        %1144 = vmatprep.subr.bf16.mxu0 0
        %1145 = vmatpush1.bf16.msra.mxu0 0
        %1146 = vmatprep.subr.bf16.mxu0 0
        %1147 = vmatpush1.bf16.msra.mxu0 0
        %1148 = vmatprep.subr.bf16.mxu0 0
        %1149 = vmatpush1.bf16.msra.mxu0 0
        %1150 = vmatprep.subr.bf16.mxu0 0
        %1151 = vmatpush1.bf16.msra.mxu0 0
        %1152 = vmatprep.subr.bf16.mxu0 0
        %1153 = vmatpush1.bf16.msra.mxu0 0
        %1154 = vmatprep.subr.bf16.mxu0 0
        %1155 = vmatpush1.bf16.msra.mxu0 0
        %1156 = vmatprep.subr.bf16.mxu0 0
        %1157 = vmatpush1.bf16.msra.mxu0 0
        %1158 = vmatprep.subr.bf16.mxu0 0
        %1159 = vmatpush1.bf16.msra.mxu0 0
        %1160 = vmatprep.subr.bf16.mxu0 0
        %1161 = vmatpush1.bf16.msra.mxu0 0
        %1162 = vmatprep.mubr.bf16.mxu0 0
        %1163 = vmatmul.mubr.bf16.gmra.mrb[0].mxu0 %v1073
        %v1164 = vpop.f32.mrb[0].mxu0
        %v1165 = vadd.f32 0.0, %v1164
        %v1166 = vpop.f32.mrb[0].mxu0
        %v1167 = vadd.f32 0.0, %v1166
        %v1168 = vpop.f32.mrb[0].mxu0
        %v1169 = vadd.f32 0.0, %v1168
        %v1170 = vpop.f32.mrb[0].mxu0
        %v1171 = vadd.f32 0.0, %v1170
        %1172 = vdwg.mxu0
        %v1173 = vadd.f32 %v1047, %v1122
        %v1174 = vadd.f32 %v1048, %v1124
        %v1175 = vadd.f32 %v1049, %v1165
        %v1176 = vadd.f32 %v1050, %v1167
        %v1177 = vadd.f32 %v1051, %v1126
        %v1178 = vadd.f32 %v1052, %v1128
        %v1179 = vadd.f32 %v1053, %v1169
        %v1180 = vadd.f32 %v1054, %v1171
        %v1181 = vld [vmem:[%s3] sm:$0xf]
        %v1183 = vlaneseq
        %v1184 = vshrl.u32 %v1183, 7
        %v1185 = vsub.s32 0, %v1184
        %v1186 = vrot.slane %v1181, %v1185
        %v1187 = vlaneseq
        %v1188 = vshrl.u32 %v1187, 7
        %v1189 = vsub.s32 1, %v1188
        %v1190 = vrot.slane %v1181, %v1189
        %v1191 = vlaneseq
        %v1192 = vshrl.u32 %v1191, 7
        %v1193 = vsub.s32 2, %v1192
        %v1194 = vrot.slane %v1181, %v1193
        %v1195 = vlaneseq
        %v1196 = vshrl.u32 %v1195, 7
        %v1197 = vsub.s32 3, %v1196
        %v1198 = vrot.slane %v1181, %v1197
        %v1203 = vadd.f32 %v1173, %v1186
        %v1204 = vadd.f32 %v1174, %v1190
        %v1205 = vadd.f32 %v1175, %v1194
        %v1206 = vadd.f32 %v1176, %v1198
        %v1207 = vadd.f32 %v1177, %v1186
        %v1208 = vadd.f32 %v1178, %v1190
        %v1209 = vadd.f32 %v1179, %v1194
        %v1210 = vadd.f32 %v1180, %v1198
        %v1211 = vmul.f32 %v1203, 0.5
        %v1212 = vmul.f32 %v1204, 0.5
        %v1213 = vmul.f32 %v1205, 0.5
        %v1214 = vmul.f32 %v1206, 0.5
        %v1215 = vmul.f32 %v1207, 0.5
        %v1216 = vmul.f32 %v1208, 0.5
        %v1217 = vmul.f32 %v1209, 0.5
        %v1218 = vmul.f32 %v1210, 0.5
        %v1219 = vmul.f32 %v1203, 0.70710677
        %v1220 = vmul.f32 %v1204, 0.70710677
        %v1221 = vmul.f32 %v1205, 0.70710677
        %v1222 = vmul.f32 %v1206, 0.70710677
        %v1223 = vmul.f32 %v1207, 0.70710677
        %v1224 = vmul.f32 %v1208, 0.70710677
        %v1225 = vmul.f32 %v1209, 0.70710677
        %v1226 = vmul.f32 %v1210, 0.70710677
        %vm1227 = vcmp.ge.f32.partialorder %v1219, 0.0
        %vm1228 = vcmp.ge.f32.partialorder %v1220, 0.0
        %vm1229 = vcmp.ge.f32.partialorder %v1221, 0.0
        %vm1230 = vcmp.ge.f32.partialorder %v1222, 0.0
        %vm1231 = vcmp.ge.f32.partialorder %v1223, 0.0
        %vm1232 = vcmp.ge.f32.partialorder %v1224, 0.0
        %vm1233 = vcmp.ge.f32.partialorder %v1225, 0.0
        %vm1234 = vcmp.ge.f32.partialorder %v1226, 0.0
        %v1235 = vsel %vm1227, 1.0, -1.0
        %v1236 = vsel %vm1228, 1.0, -1.0
        %v1237 = vsel %vm1229, 1.0, -1.0
        %v1238 = vsel %vm1230, 1.0, -1.0
        %v1239 = vsel %vm1231, 1.0, -1.0
        %v1240 = vsel %vm1232, 1.0, -1.0
        %v1241 = vsel %vm1233, 1.0, -1.0
        %v1242 = vsel %vm1234, 1.0, -1.0
        %v1243 = vand.u32 2147483647, %v1219
        %v1244 = vand.u32 2147483647, %v1220
        %v1245 = vand.u32 2147483647, %v1221
        %v1246 = vand.u32 2147483647, %v1222
        %v1247 = vand.u32 2147483647, %v1223
        %v1248 = vand.u32 2147483647, %v1224
        %v1249 = vand.u32 2147483647, %v1225
        %v1250 = vand.u32 2147483647, %v1226
        %v1251 = vmul.f32 %v1243, 0.3275911
        %v1252 = vmul.f32 %v1244, 0.3275911
        %v1253 = vmul.f32 %v1245, 0.3275911
        %v1254 = vmul.f32 %v1246, 0.3275911
        %v1255 = vmul.f32 %v1247, 0.3275911
        %v1256 = vmul.f32 %v1248, 0.3275911
        %v1257 = vmul.f32 %v1249, 0.3275911
        %v1258 = vmul.f32 %v1250, 0.3275911
        %v1259 = vadd.f32 %v1251, 1.0
        %v1260 = vadd.f32 %v1252, 1.0
        %v1261 = vadd.f32 %v1253, 1.0
        %v1262 = vadd.f32 %v1254, 1.0
        %v1263 = vadd.f32 %v1255, 1.0
        %v1264 = vadd.f32 %v1256, 1.0
        %v1265 = vadd.f32 %v1257, 1.0
        %v1266 = vadd.f32 %v1258, 1.0
        %v1267 = vrcp.pop %v1259
        %v1268 = vmul.f32 1.0, %v1267
        %v1269 = vrcp.pop %v1260
        %v1270 = vmul.f32 1.0, %v1269
        %v1271 = vrcp.pop %v1261
        %v1272 = vmul.f32 1.0, %v1271
        %v1273 = vrcp.pop %v1262
        %v1274 = vmul.f32 1.0, %v1273
        %v1275 = vrcp.pop %v1263
        %v1276 = vmul.f32 1.0, %v1275
        %v1277 = vrcp.pop %v1264
        %v1278 = vmul.f32 1.0, %v1277
        %v1279 = vrcp.pop %v1265
        %v1280 = vmul.f32 1.0, %v1279
        %v1281 = vrcp.pop %v1266
        %v1282 = vmul.f32 1.0, %v1281
        %v1283 = vmul.f32 %v1268, 1.0614054
        %v1284 = vmul.f32 %v1270, 1.0614054
        %v1285 = vmul.f32 %v1272, 1.0614054
        %v1286 = vmul.f32 %v1274, 1.0614054
        %v1287 = vmul.f32 %v1276, 1.0614054
        %v1288 = vmul.f32 %v1278, 1.0614054
        %v1289 = vmul.f32 %v1280, 1.0614054
        %v1290 = vmul.f32 %v1282, 1.0614054
        %v1291 = vadd.f32 %v1283, -1.4531521
        %v1292 = vadd.f32 %v1284, -1.4531521
        %v1293 = vadd.f32 %v1285, -1.4531521
        %v1294 = vadd.f32 %v1286, -1.4531521
        %v1295 = vadd.f32 %v1287, -1.4531521
        %v1296 = vadd.f32 %v1288, -1.4531521
        %v1297 = vadd.f32 %v1289, -1.4531521
        %v1298 = vadd.f32 %v1290, -1.4531521
        %v1299 = vmul.f32 %v1291, %v1268
        %v1300 = vmul.f32 %v1292, %v1270
        %v1301 = vmul.f32 %v1293, %v1272
        %v1302 = vmul.f32 %v1294, %v1274
        %v1303 = vmul.f32 %v1295, %v1276
        %v1304 = vmul.f32 %v1296, %v1278
        %v1305 = vmul.f32 %v1297, %v1280
        %v1306 = vmul.f32 %v1298, %v1282
        %v1307 = vadd.f32 %v1299, 1.4214138
        %v1308 = vadd.f32 %v1300, 1.4214138
        %v1309 = vadd.f32 %v1301, 1.4214138
        %v1310 = vadd.f32 %v1302, 1.4214138
        %v1311 = vadd.f32 %v1303, 1.4214138
        %v1312 = vadd.f32 %v1304, 1.4214138
        %v1313 = vadd.f32 %v1305, 1.4214138
        %v1314 = vadd.f32 %v1306, 1.4214138
        %v1315 = vmul.f32 %v1307, %v1268
        %v1316 = vmul.f32 %v1308, %v1270
        %v1317 = vmul.f32 %v1309, %v1272
        %v1318 = vmul.f32 %v1310, %v1274
        %v1319 = vmul.f32 %v1311, %v1276
        %v1320 = vmul.f32 %v1312, %v1278
        %v1321 = vmul.f32 %v1313, %v1280
        %v1322 = vmul.f32 %v1314, %v1282
        %v1323 = vadd.f32 %v1315, -0.28449672
        %v1324 = vadd.f32 %v1316, -0.28449672
        %v1325 = vadd.f32 %v1317, -0.28449672
        %v1326 = vadd.f32 %v1318, -0.28449672
        %v1327 = vadd.f32 %v1319, -0.28449672
        %v1328 = vadd.f32 %v1320, -0.28449672
        %v1329 = vadd.f32 %v1321, -0.28449672
        %v1330 = vadd.f32 %v1322, -0.28449672
        %v1331 = vmul.f32 %v1323, %v1268
        %v1332 = vmul.f32 %v1324, %v1270
        %v1333 = vmul.f32 %v1325, %v1272
        %v1334 = vmul.f32 %v1326, %v1274
        %v1335 = vmul.f32 %v1327, %v1276
        %v1336 = vmul.f32 %v1328, %v1278
        %v1337 = vmul.f32 %v1329, %v1280
        %v1338 = vmul.f32 %v1330, %v1282
        %v1339 = vadd.f32 %v1331, 0.2548296
        %v1340 = vadd.f32 %v1332, 0.2548296
        %v1341 = vadd.f32 %v1333, 0.2548296
        %v1342 = vadd.f32 %v1334, 0.2548296
        %v1343 = vadd.f32 %v1335, 0.2548296
        %v1344 = vadd.f32 %v1336, 0.2548296
        %v1345 = vadd.f32 %v1337, 0.2548296
        %v1346 = vadd.f32 %v1338, 0.2548296
        %v1347 = vmul.f32 %v1339, %v1268
        %v1348 = vmul.f32 %v1340, %v1270
        %v1349 = vmul.f32 %v1341, %v1272
        %v1350 = vmul.f32 %v1342, %v1274
        %v1351 = vmul.f32 %v1343, %v1276
        %v1352 = vmul.f32 %v1344, %v1278
        %v1353 = vmul.f32 %v1345, %v1280
        %v1354 = vmul.f32 %v1346, %v1282
        %v1355 = vsub.f32 0.0, %v1243
        %v1356 = vsub.f32 0.0, %v1244
        %v1357 = vsub.f32 0.0, %v1245
        %v1358 = vsub.f32 0.0, %v1246
        %v1359 = vsub.f32 0.0, %v1247
        %v1360 = vsub.f32 0.0, %v1248
        %v1361 = vsub.f32 0.0, %v1249
        %v1362 = vsub.f32 0.0, %v1250
        %v1363 = vmul.f32 %v1355, %v1243
        %v1364 = vmul.f32 %v1356, %v1244
        %v1365 = vmul.f32 %v1357, %v1245
        %v1366 = vmul.f32 %v1358, %v1246
        %v1367 = vmul.f32 %v1359, %v1247
        %v1368 = vmul.f32 %v1360, %v1248
        %v1369 = vmul.f32 %v1361, %v1249
        %v1370 = vmul.f32 %v1362, %v1250
        %v1371 = vmul.f32 %v1363, 1.442695
        %v1372 = vpow.pop %v1371
        %v1373 = vmul.f32 %v1364, 1.442695
        %v1374 = vpow.pop %v1373
        %v1375 = vmul.f32 %v1365, 1.442695
        %v1376 = vpow.pop %v1375
        %v1377 = vmul.f32 %v1366, 1.442695
        %v1378 = vpow.pop %v1377
        %v1379 = vmul.f32 %v1367, 1.442695
        %v1380 = vpow.pop %v1379
        %v1381 = vmul.f32 %v1368, 1.442695
        %v1382 = vpow.pop %v1381
        %v1383 = vmul.f32 %v1369, 1.442695
        %v1384 = vpow.pop %v1383
        %v1385 = vmul.f32 %v1370, 1.442695
        %v1386 = vpow.pop %v1385
        %v1387 = vmul.f32 %v1347, %v1372
        %v1388 = vmul.f32 %v1348, %v1374
        %v1389 = vmul.f32 %v1349, %v1376
        %v1390 = vmul.f32 %v1350, %v1378
        %v1391 = vmul.f32 %v1351, %v1380
        %v1392 = vmul.f32 %v1352, %v1382
        %v1393 = vmul.f32 %v1353, %v1384
        %v1394 = vmul.f32 %v1354, %v1386
        %v1395 = vsub.f32 1.0, %v1387
        %v1396 = vsub.f32 1.0, %v1388
        %v1397 = vsub.f32 1.0, %v1389
        %v1398 = vsub.f32 1.0, %v1390
        %v1399 = vsub.f32 1.0, %v1391
        %v1400 = vsub.f32 1.0, %v1392
        %v1401 = vsub.f32 1.0, %v1393
        %v1402 = vsub.f32 1.0, %v1394
        %v1403 = vmul.f32 %v1235, %v1395
        %v1404 = vmul.f32 %v1236, %v1396
        %v1405 = vmul.f32 %v1237, %v1397
        %v1406 = vmul.f32 %v1238, %v1398
        %v1407 = vmul.f32 %v1239, %v1399
        %v1408 = vmul.f32 %v1240, %v1400
        %v1409 = vmul.f32 %v1241, %v1401
        %v1410 = vmul.f32 %v1242, %v1402
        %v1411 = vadd.f32 %v1403, 1.0
        %v1412 = vadd.f32 %v1404, 1.0
        %v1413 = vadd.f32 %v1405, 1.0
        %v1414 = vadd.f32 %v1406, 1.0
        %v1415 = vadd.f32 %v1407, 1.0
        %v1416 = vadd.f32 %v1408, 1.0
        %v1417 = vadd.f32 %v1409, 1.0
        %v1418 = vadd.f32 %v1410, 1.0
        %v1419 = vmul.f32 %v1211, %v1411
        %v1420 = vmul.f32 %v1212, %v1412
        %v1421 = vmul.f32 %v1213, %v1413
        %v1422 = vmul.f32 %v1214, %v1414
        %v1423 = vmul.f32 %v1215, %v1415
        %v1424 = vmul.f32 %v1216, %v1416
        %v1425 = vmul.f32 %v1217, %v1417
        %v1426 = vmul.f32 %v1218, %v1418
        %1427 = vst [vmem:[%s261] sm:$0xff] %v1419
        %1428 = vst [vmem:[%s261 + $0x8] sm:$0xff] %v1420
        %1429 = vst [vmem:[%s261 + $0x10] sm:$0xff] %v1421
        %1430 = vst [vmem:[%s261 + $0x18] sm:$0xff] %v1422
        %1431 = vst [vmem:[%s261 + $0x20] sm:$0xff] %v1423
        %1432 = vst [vmem:[%s261 + $0x28] sm:$0xff] %v1424
        %1433 = vst [vmem:[%s261 + $0x30] sm:$0xff] %v1425
        %1434 = vst [vmem:[%s261 + $0x38] sm:$0xff] %v1426
        %s1435 = sand.u32 %s141, 1
        %s1436 = scalar_lea.sflag [#allocation4], %s1435
        %s1437 = sand.u32 %s141, 1
        %s1438 = smul.addr %s1437, 64
        %s1439 = scalar_lea.vmem [#allocation5], %s1438
        // Predicated region
        $region41: #{tpu_custom_call.1} parent=35 // pred_check
          %p1440 = pneg %p151
        $region42: #{tpu_custom_call.1} parent=35 // pred_check_branch
          %1442 = sbr.rel (%p1440) target = $region44
        $region43: #{tpu_custom_call.1} parent=35 // pred_region
          %s1443 = smul.u32 2, %s24
          %s1445 = ssub.s32 1024, 1024
          %1446 = vsyncadd %s1436, %s1445
          %s1447 = smul.addr %s1443, 4
          %s1448 = smul.addr %s23, 8
          %s1449 = sadd.s32 %s1447, %s1448
          %s1450 = smul.addr %s1449, 128
          %s1451 = scalar_lea.hbm %s4, %s1450
          %s1452 = sshll.u32 %s1439, 4
          %s1453 = int_to_ptr.vmem [resolvable:$true] %s1452
          %1458 = dma.vmem_to_hbm [thread:$0]  %s1453, 1024, %s1451, %s1436, 512, 512, 32
        $region44: #{tpu_custom_call.1} parent=35 // pred_fallthru
          _
      $region36: #{tpu_custom_call.1} parent=5 // pred_fallthru
        _
      %p1459 = scmp.le.s32.totalorder 2, %s14
      // Predicated region
      $region45: #{tpu_custom_call.1} parent=5 // pred_check
        %p1460 = pneg %p1459
      $region46: #{tpu_custom_call.1} parent=5 // pred_check_branch
        %1462 = sbr.rel (%p1460) target = $region48
      $region47: #{tpu_custom_call.1} parent=5 // pred_region
        %s1463 = ssub.s32 %s14, 2
        // Predicated region
        $region49: #{tpu_custom_call.1} parent=47 // pred_check
          %p1464 = pneg %p157
        $region50: #{tpu_custom_call.1} parent=47 // pred_check_branch
          %1466 = sbr.rel (%p1464) target = $region52
        $region51: #{tpu_custom_call.1} parent=47 // pred_region
          %s1467 = sand.u32 %s142, 1
          %s1468 = scalar_lea.sflag [#allocation4], %s1467
          %s1469 = sand.u32 %s142, 1
          %s1470 = smul.addr %s1469, 64
          %s1471 = scalar_lea.vmem [#allocation5], %s1470
          %1472 = dma.done %s1468, 1024
        $region52: #{tpu_custom_call.1} parent=47 // pred_fallthru
          _
      $region48: #{tpu_custom_call.1} parent=5 // pred_fallthru
        _
    $region6: #{tpu_custom_call.1} parent=1 // loop_footer
      %s18 = sadd.s32 1, %s14
    $region7: #{tpu_custom_call.1} parent=1 // loop_footer_branch
      %13 = sbr.rel target = $region3
    $region8: #{tpu_custom_call.1} parent=1 // loop_exit
      _
    %1473 = vsyncpa [#allocation3], 1
    %s1474 = scalar_lea.sflag [#allocation3], 1
    %1475 = vsyncpa %s1474, 1
    %1476 = vsyncpa [#allocation4], 1
    %s1477 = scalar_lea.sflag [#allocation4], 1
    %1478 = vsyncpa %s1477, 1

</llo_original>
